<compile_context>
chip_gen: v7x
topology: tpu7x:2x2x1
jax: 0.10.0
libtpu: 0.0.40
codegen_flags: <defaults>
</compile_context>

<pallas_src>
import functools

import jax
import jax.numpy as jnp
import numpy as np
from jax import lax
from jax.experimental import pallas as pl
from jax.experimental.pallas import tpu as pltpu


# ----------------------------------------------------------------------------
# Tiling helper: lane-dim tile (multiple of 128) + padded M
# ----------------------------------------------------------------------------
def _tile_m(M, target=512):
    Mp = ((M + 127) // 128) * 128
    if Mp <= 128:
        return 128, 128
    # prefer `target`, but keep at least 2 grid steps when M allows
    tm = max(128, min(target, (Mp // 256) * 128))
    Mp = ((M + tm - 1) // tm) * tm
    return tm, Mp


# ----------------------------------------------------------------------------
# Pallas kernels (transposed layout: activations are (channels, M))
# ----------------------------------------------------------------------------
def _resblock_kernel(a_ref, w1_ref, w2_ref, x_ref, o_ref):
    """out = x + W2 @ relu( W1 @ relu(patches) ).

    a_ref : (27*Cin, tm)  bf16   3x3x3 im2col patches of x (channel-minor)
    w1_ref: (Ch, 27*Cin)  bf16
    w2_ref: (Cin, Ch)     bf16
    x_ref : (Cin, tm)     f32    residual input
    o_ref : (Cin, tm)     f32
    """
    a = jnp.maximum(a_ref[...], 0).astype(jnp.bfloat16)      # ReLU before conv1
    h = jnp.dot(w1_ref[...], a, preferred_element_type=jnp.float32)
    h = jnp.maximum(h, 0.0).astype(jnp.bfloat16)              # ReLU before conv2
    y = jnp.dot(w2_ref[...], h, preferred_element_type=jnp.float32)
    o_ref[...] = x_ref[...] + y


def _convt_kernel(a_ref, w_ref, b_ref, o_ref, *, post_relu):
    """out = [relu]( Wc @ patches + bias )   (sub-pixel transposed conv).

    a_ref : (27*Cin, tm)   bf16
    w_ref : (8*Cout, 27*Cin) bf16  combined parity weight
    b_ref : (8*Cout, 1)    f32
    o_ref : (8*Cout, tm)   f32
    """
    y = jnp.dot(w_ref[...], a_ref[...], preferred_element_type=jnp.float32)
    y = y + b_ref[...]
    if post_relu:
        y = jnp.maximum(y, 0.0)
    o_ref[...] = y


# ----------------------------------------------------------------------------
# JAX glue: im2col (transposed), weight layout transforms
# ----------------------------------------------------------------------------
def im2col_3d_t(x_ndhwc, ksize, pad):
    """x: (N,D,H,W,C) -> patches (ksize^3*C, N*Do*Ho*Wo); K-axis order is
    (kd, kh, kw, c) with channels innermost."""
    xp = jnp.pad(x_ndhwc,
                 ((0, 0), (pad, pad), (pad, pad), (pad, pad), (0, 0)))
    N, Dp, Hp, Wp, C = xp.shape
    Do, Ho, Wo = Dp - ksize + 1, Hp - ksize + 1, Wp - ksize + 1
    cols = []
    for kd in range(ksize):
        for kh in range(ksize):
            for kw in range(ksize):
                cols.append(xp[:, kd:kd + Do, kh:kh + Ho, kw:kw + Wo, :])
    p = jnp.stack(cols, axis=0)                      # (K^3, N, Do, Ho, Wo, C)
    p = jnp.transpose(p, (0, 5, 1, 2, 3, 4))         # (K^3, C, N, Do, Ho, Wo)
    return p.reshape(ksize ** 3 * C, N * Do * Ho * Wo), (N, Do, Ho, Wo)


# parity r in {0,1}; offset o in {0,1,2} within the padded 3-neighborhood.
# value = kernel tap index of the 4-wide transposed-conv kernel, or -1 (zero).
_TAP = ((3, 1, -1),     # even outputs: taps k=3 (id=q-1), k=1 (id=q)
        (-1, 2, 0))     # odd  outputs: taps k=2 (id=q),   k=0 (id=q+1)


def convtrans_subpixel_weight(w):
    """PyTorch ConvTranspose3d weight (Cin, Cout, 4,4,4) -> combined sub-pixel
    matrix (8*Cout, 27*Cin).  Row = parity(rd,rh,rw)-major, Cout-minor; column
    order matches im2col_3d_t (tap-major, channel-minor)."""
    Cin, Cout = w.shape[0], w.shape[1]
    wt = jnp.transpose(w, (2, 3, 4, 0, 1))           # (4,4,4,Cin,Cout)
    zero = jnp.zeros((Cin, Cout), w.dtype)
    rows = []
    for rd in range(2):
        for rh in range(2):
            for rw in range(2):
                cols = []
                for od in range(3):
                    for oh in range(3):
                        for ow in range(3):
                            kd, kh, kw = _TAP[rd][od], _TAP[rh][oh], _TAP[rw][ow]
                            if kd < 0 or kh < 0 or kw < 0:
                                cols.append(zero)
                            else:
                                cols.append(wt[kd, kh, kw])       # (Cin, Cout)
                blk = jnp.stack(cols, axis=0).reshape(27 * Cin, Cout)
                rows.append(blk.T)                                # (Cout, 27*Cin)
    return jnp.concatenate(rows, axis=0)                          # (8*Cout, 27*Cin)


# ----------------------------------------------------------------------------
# Layer wrappers (pallas_call plumbing)
# ----------------------------------------------------------------------------
def residual_block(x_ndhwc, w1, w2, *, target_tm=512):
    """x + conv1x1( relu( conv3x3( relu(x) ) ) ), fully fused in one kernel."""
    N, D, H, W, Cin = x_ndhwc.shape
    Ch = w1.shape[0]
    M = N * D * H * W
    K1 = 27 * Cin

    a, _ = im2col_3d_t(x_ndhwc, 3, 1)                             # (27*Cin, M)
    a = a.astype(jnp.bfloat16)
    w1m = jnp.transpose(w1, (0, 2, 3, 4, 1)).reshape(Ch, K1).astype(jnp.bfloat16)
    w2m = w2.reshape(Cin, Ch).astype(jnp.bfloat16)
    xt = jnp.transpose(x_ndhwc, (4, 0, 1, 2, 3)).reshape(Cin, M).astype(jnp.float32)

    tm, Mp = _tile_m(M, target_tm)
    if Mp != M:
        a = jnp.pad(a, ((0, 0), (0, Mp - M)))
        xt = jnp.pad(xt, ((0, 0), (0, Mp - M)))

    out = pl.pallas_call(
        _resblock_kernel,
        out_shape=jax.ShapeDtypeStruct((Cin, Mp), jnp.float32),
        grid_spec=pltpu.PrefetchScalarGridSpec(
            num_scalar_prefetch=0,
            grid=(Mp // tm,),
            in_specs=[
                pl.BlockSpec((K1, tm), lambda i: (0, i)),   # patches
                pl.BlockSpec((Ch, K1), lambda i: (0, 0)),   # W1 (resident)
                pl.BlockSpec((Cin, Ch), lambda i: (0, 0)),  # W2 (resident)
                pl.BlockSpec((Cin, tm), lambda i: (0, i)),  # residual x
            ],
            out_specs=pl.BlockSpec((Cin, tm), lambda i: (0, i)),
        ),
        compiler_params=pltpu.CompilerParams(
            dimension_semantics=("parallel",)),
    )(a, w1m, w2m, xt)

    out = out[:, :M]
    return jnp.transpose(out.reshape(Cin, N, D, H, W), (1, 2, 3, 4, 0))


def conv_transpose3d(x_ndhwc, w, b, *, post_relu, target_tm=512):
    """ConvTranspose3d(k=4, s=2, p=1) via sub-pixel decomposition, bias (+ReLU)
    fused in the kernel epilogue."""
    N, D, H, W, Cin = x_ndhwc.shape
    Cout = w.shape[1]
    M = N * D * H * W
    K1 = 27 * Cin
    R = 8 * Cout

    a, _ = im2col_3d_t(x_ndhwc, 3, 1)                             # (27*Cin, M)
    a = a.astype(jnp.bfloat16)
    wc = convtrans_subpixel_weight(w).astype(jnp.bfloat16)        # (8*Cout, 27*Cin)
    bc = jnp.tile(b.reshape(1, Cout), (8, 1)).reshape(R, 1).astype(jnp.float32)

    tm, Mp = _tile_m(M, target_tm)
    if Mp != M:
        a = jnp.pad(a, ((0, 0), (0, Mp - M)))

    kernel = functools.partial(_convt_kernel, post_relu=post_relu)
    out = pl.pallas_call(
        kernel,
        out_shape=jax.ShapeDtypeStruct((R, Mp), jnp.float32),
        grid_spec=pltpu.PrefetchScalarGridSpec(
            num_scalar_prefetch=0,
            grid=(Mp // tm,),
            in_specs=[
                pl.BlockSpec((K1, tm), lambda i: (0, i)),   # patches
                pl.BlockSpec((R, K1), lambda i: (0, 0)),    # combined weight
                pl.BlockSpec((R, 1), lambda i: (0, 0)),     # bias
            ],
            out_specs=pl.BlockSpec((R, tm), lambda i: (0, i)),
        ),
        compiler_params=pltpu.CompilerParams(
            dimension_semantics=("parallel",)),
    )(a, wc, bc)

    out = out[:, :M]
    # interleave parities: (8*Cout, M) -> (N, 2D, 2H, 2W, Cout)
    out = out.reshape(2, 2, 2, Cout, N, D, H, W)
    out = jnp.transpose(out, (4, 5, 0, 6, 1, 7, 2, 3))
    return out.reshape(N, 2 * D, 2 * H, 2 * W, Cout)


# ----------------------------------------------------------------------------
# Decoder forward (Pallas path)
# ----------------------------------------------------------------------------
def decoder_forward(x_ncdhw, params):
    x = jnp.transpose(x_ncdhw, (0, 2, 3, 4, 1)).astype(jnp.float32)  # NDHWC
    for (w1, w2) in params["res"]:
        x = residual_block(x, w1, w2)
    y = conv_transpose3d(x, params["wt1"], params["bt1"], post_relu=True)
    z = conv_transpose3d(y, params["wt2"], params["bt2"], post_relu=False)
    return jnp.transpose(z, (0, 4, 1, 2, 3))                         # NCDHW


# ----------------------------------------------------------------------------
# Pure-JAX reference (mirrors the PyTorch module semantics exactly, f32)
# ----------------------------------------------------------------------------
def decoder_reference(x_ncdhw, params):
    dn = ("NCDHW", "OIDHW", "NCDHW")
    prec = jax.lax.Precision.HIGHEST
    x = x_ncdhw.astype(jnp.float32)
    for (w1, w2) in params["res"]:
        h = jax.nn.relu(x)
        h = lax.conv_general_dilated(h, w1, (1, 1, 1), [(1, 1)] * 3,
                                     dimension_numbers=dn, precision=prec)
        h = jax.nn.relu(h)
        h = lax.conv_general_dilated(h, w2, (1, 1, 1), [(0, 0)] * 3,
                                     dimension_numbers=dn, precision=prec)
        x = x + h
    wt1 = params["wt1"]
    w1c = jnp.transpose(wt1[:, :, ::-1, ::-1, ::-1], (1, 0, 2, 3, 4))
    y = lax.conv_general_dilated(x, w1c, (1, 1, 1), [(2, 2)] * 3,
                                 lhs_dilation=(2, 2, 2),
                                 dimension_numbers=dn, precision=prec)
    y = jax.nn.relu(y + params["bt1"].reshape(1, -1, 1, 1, 1))
    wt2 = params["wt2"]
    w2c = jnp.transpose(wt2[:, :, ::-1, ::-1, ::-1], (1, 0, 2, 3, 4))
    z = lax.conv_general_dilated(y, w2c, (1, 1, 1), [(2, 2)] * 3,
                                 lhs_dilation=(2, 2, 2),
                                 dimension_numbers=dn, precision=prec)
    return z + params["bt2"].reshape(1, -1, 1, 1, 1)


# ----------------------------------------------------------------------------
# main
# ----------------------------------------------------------------------------
if __name__ == "__main__":
    # small, decoder-consistent shapes
    N, in_channels, D = 2, 4, 4
    num_hiddens = 16
    num_residual_layers = 2
    num_residual_hiddens = 8

    key = jax.random.PRNGKey(0)
    keys = jax.random.split(key, 2 * num_residual_layers + 5)

    params = {"res": []}
    k_i = 0
    for _ in range(num_residual_layers):
        w1 = 0.1 * jax.random.normal(
            keys[k_i], (num_residual_hiddens, in_channels, 3, 3, 3),
            jnp.float32); k_i += 1
        w2 = 0.1 * jax.random.normal(
            keys[k_i], (in_channels, num_residual_hiddens, 1, 1, 1),
            jnp.float32); k_i += 1
        params["res"].append((w1, w2))
    params["wt1"] = 0.1 * jax.random.normal(
        keys[k_i], (in_channels, num_hiddens // 2, 4, 4, 4), jnp.float32); k_i += 1
    params["bt1"] = 0.1 * jax.random.normal(
        keys[k_i], (num_hiddens // 2,), jnp.float32); k_i += 1
    params["wt2"] = 0.1 * jax.random.normal(
        keys[k_i], (num_hiddens // 2, 1, 4, 4, 4), jnp.float32); k_i += 1
    params["bt2"] = 0.1 * jax.random.normal(keys[k_i], (1,), jnp.float32); k_i += 1

    x = jax.random.normal(keys[k_i], (N, in_channels, D, D, D), jnp.float32)

    fwd = jax.jit(decoder_forward)
    out = jax.block_until_ready(fwd(x, params))

    assert out.shape == (N, 1, 4 * D, 4 * D, 4 * D), out.shape
    ref = jax.block_until_ready(decoder_reference(x, params))
    # bf16 MXU inputs / f32 accumulation -> slightly looser tolerance vs f32 ref
    np.testing.assert_allclose(np.asarray(out), np.asarray(ref),
                               rtol=2e-2, atol=3e-2)
    print("KERNEL_OK")
</pallas_src>

<mosaic_0001>
module attributes {stable_mosaic.version = 11 : i64} {
  func.func @_resblock_kernel(%arg0: i32, %arg1: memref<108x128xbf16, #tpu.memory_space<vmem>>, %arg2: memref<8x108xbf16, #tpu.memory_space<vmem>>, %arg3: memref<4x8xbf16, #tpu.memory_space<vmem>>, %arg4: memref<4x128xf32, #tpu.memory_space<vmem>>, %arg5: memref<4x128xf32, #tpu.memory_space<vmem>>) attributes {dimension_semantics = [#tpu.dimension_semantics<parallel>], iteration_bounds = array<i64: 1>, scalar_prefetch = 0 : i64, scratch_operands = 0 : i64, tpu.core_type = #tpu.core_type<tc>, window_params = [{transform_indices = @transform_0, window_bounds = array<i64: 108, 128>}, {pipeline_mode = #tpu.pipeline_mode<synchronous>, transform_indices = @transform_1, window_bounds = array<i64: 8, 108>}, {pipeline_mode = #tpu.pipeline_mode<synchronous>, transform_indices = @transform_2, window_bounds = array<i64: 4, 8>}, {transform_indices = @transform_3, window_bounds = array<i64: 4, 128>}, {transform_indices = @transform_4, window_bounds = array<i64: 4, 128>}]} {
    %c0 = arith.constant 0 : index
    %c0_0 = arith.constant 0 : index
    %0 = vector.load %arg1[%c0, %c0_0] : memref<108x128xbf16, #tpu.memory_space<vmem>>, vector<108x128xbf16>
    %cst = arith.constant 0.000000e+00 : bf16
    %1 = vector.broadcast %cst : bf16 to vector<108x128xbf16>
    %2 = arith.maximumf %0, %1 : vector<108x128xbf16>
    %c0_1 = arith.constant 0 : index
    %c0_2 = arith.constant 0 : index
    %3 = vector.load %arg2[%c0_1, %c0_2] : memref<8x108xbf16, #tpu.memory_space<vmem>>, vector<8x108xbf16>
    %cst_3 = arith.constant dense<0.000000e+00> : vector<8x128xf32>
    %4 = tpu.matmul %3, %2, %cst_3 {dimension_numbers = #tpu.dot_dimension_numbers<[1], [0], [0], [1], [0, 0, 1, 1], [], []>} : vector<8x108xbf16>, vector<108x128xbf16>, vector<8x128xf32> -> vector<8x128xf32>
    %cst_4 = arith.constant 0.000000e+00 : f32
    %5 = vector.broadcast %cst_4 : f32 to vector<8x128xf32>
    %6 = arith.maximumf %4, %5 : vector<8x128xf32>
    %7 = arith.truncf %6 : vector<8x128xf32> to vector<8x128xbf16>
    %c0_5 = arith.constant 0 : index
    %c0_6 = arith.constant 0 : index
    %8 = vector.load %arg3[%c0_5, %c0_6] : memref<4x8xbf16, #tpu.memory_space<vmem>>, vector<4x8xbf16>
    %cst_7 = arith.constant dense<0.000000e+00> : vector<4x128xf32>
    %9 = tpu.matmul %8, %7, %cst_7 {dimension_numbers = #tpu.dot_dimension_numbers<[1], [0], [0], [1], [0, 0, 1, 1], [], []>} : vector<4x8xbf16>, vector<8x128xbf16>, vector<4x128xf32> -> vector<4x128xf32>
    %c0_8 = arith.constant 0 : index
    %c0_9 = arith.constant 0 : index
    %10 = vector.load %arg4[%c0_8, %c0_9] : memref<4x128xf32, #tpu.memory_space<vmem>>, vector<4x128xf32>
    %11 = arith.addf %10, %9 : vector<4x128xf32>
    %c0_10 = arith.constant 0 : index
    %c0_11 = arith.constant 0 : index
    %12 = vector.load %arg5[%c0_10, %c0_11] : memref<4x128xf32, #tpu.memory_space<vmem>>, vector<4x128xf32>
    tpu.vector_store %arg5[%c0_10, %c0_11], %11 {strides = array<i32>} : memref<4x128xf32, #tpu.memory_space<vmem>>, vector<4x128xf32>,
    return
  }
  func.func @transform_0(%arg0: i32) -> (i32, i32) {
    %c0_i32 = arith.constant 0 : i32
    %c0_i32_0 = arith.constant 0 : i32
    return %c0_i32, %arg0 : i32, i32
  }
  func.func @transform_1(%arg0: i32) -> (i32, i32) {
    %c0_i32 = arith.constant 0 : i32
    %c0_i32_0 = arith.constant 0 : i32
    %c0_i32_1 = arith.constant 0 : i32
    return %c0_i32, %c0_i32_0 : i32, i32
  }
  func.func @transform_2(%arg0: i32) -> (i32, i32) {
    %c0_i32 = arith.constant 0 : i32
    %c0_i32_0 = arith.constant 0 : i32
    %c0_i32_1 = arith.constant 0 : i32
    return %c0_i32, %c0_i32_0 : i32, i32
  }
  func.func @transform_3(%arg0: i32) -> (i32, i32) {
    %c0_i32 = arith.constant 0 : i32
    %c0_i32_0 = arith.constant 0 : i32
    return %c0_i32, %arg0 : i32, i32
  }
  func.func @transform_4(%arg0: i32) -> (i32, i32) {
    %c0_i32 = arith.constant 0 : i32
    %c0_i32_0 = arith.constant 0 : i32
    return %c0_i32, %arg0 : i32, i32
  }
}

module attributes {stable_mosaic.version = 11 : i64} {
  func.func @_convt_kernel(%arg0: i32, %arg1: memref<108x128xbf16, #tpu.memory_space<vmem>>, %arg2: memref<64x108xbf16, #tpu.memory_space<vmem>>, %arg3: memref<64x1xf32, #tpu.memory_space<vmem>>, %arg4: memref<64x128xf32, #tpu.memory_space<vmem>>) attributes {dimension_semantics = [#tpu.dimension_semantics<parallel>], iteration_bounds = array<i64: 1>, scalar_prefetch = 0 : i64, scratch_operands = 0 : i64, tpu.core_type = #tpu.core_type<tc>, window_params = [{transform_indices = @transform_0, window_bounds = array<i64: 108, 128>}, {pipeline_mode = #tpu.pipeline_mode<synchronous>, transform_indices = @transform_1, window_bounds = array<i64: 64, 108>}, {pipeline_mode = #tpu.pipeline_mode<synchronous>, transform_indices = @transform_2, window_bounds = array<i64: 64, 1>}, {transform_indices = @transform_3, window_bounds = array<i64: 64, 128>}]} {
    %c0 = arith.constant 0 : index
    %c0_0 = arith.constant 0 : index
    %0 = vector.load %arg2[%c0, %c0_0] : memref<64x108xbf16, #tpu.memory_space<vmem>>, vector<64x108xbf16>
    %c0_1 = arith.constant 0 : index
    %c0_2 = arith.constant 0 : index
    %1 = vector.load %arg1[%c0_1, %c0_2] : memref<108x128xbf16, #tpu.memory_space<vmem>>, vector<108x128xbf16>
    %cst = arith.constant dense<0.000000e+00> : vector<64x128xf32>
    %2 = tpu.matmul %0, %1, %cst {dimension_numbers = #tpu.dot_dimension_numbers<[1], [0], [0], [1], [0, 0, 1, 1], [], []>} : vector<64x108xbf16>, vector<108x128xbf16>, vector<64x128xf32> -> vector<64x128xf32>
    %c0_3 = arith.constant 0 : index
    %c0_4 = arith.constant 0 : index
    %3 = vector.load %arg3[%c0_3, %c0_4] : memref<64x1xf32, #tpu.memory_space<vmem>>, vector<64x1xf32>
    %4 = vector.broadcast %3 : vector<64x1xf32> to vector<64x128xf32>
    %5 = arith.addf %2, %4 : vector<64x128xf32>
    %cst_5 = arith.constant 0.000000e+00 : f32
    %6 = vector.broadcast %cst_5 : f32 to vector<64x128xf32>
    %7 = arith.maximumf %5, %6 : vector<64x128xf32>
    %c0_6 = arith.constant 0 : index
    %c0_7 = arith.constant 0 : index
    %8 = vector.load %arg4[%c0_6, %c0_7] : memref<64x128xf32, #tpu.memory_space<vmem>>, vector<64x128xf32>
    tpu.vector_store %arg4[%c0_6, %c0_7], %7 {strides = array<i32>} : memref<64x128xf32, #tpu.memory_space<vmem>>, vector<64x128xf32>,
    return
  }
  func.func @transform_0(%arg0: i32) -> (i32, i32) {
    %c0_i32 = arith.constant 0 : i32
    %c0_i32_0 = arith.constant 0 : i32
    return %c0_i32, %arg0 : i32, i32
  }
  func.func @transform_1(%arg0: i32) -> (i32, i32) {
    %c0_i32 = arith.constant 0 : i32
    %c0_i32_0 = arith.constant 0 : i32
    %c0_i32_1 = arith.constant 0 : i32
    return %c0_i32, %c0_i32_0 : i32, i32
  }
  func.func @transform_2(%arg0: i32) -> (i32, i32) {
    %c0_i32 = arith.constant 0 : i32
    %c0_i32_0 = arith.constant 0 : i32
    %c0_i32_1 = arith.constant 0 : i32
    return %c0_i32, %c0_i32_0 : i32, i32
  }
  func.func @transform_3(%arg0: i32) -> (i32, i32) {
    %c0_i32 = arith.constant 0 : i32
    %c0_i32_0 = arith.constant 0 : i32
    return %c0_i32, %arg0 : i32, i32
  }
}

module attributes {stable_mosaic.version = 11 : i64} {
  func.func @_convt_kernel(%arg0: i32, %arg1: memref<216x512xbf16, #tpu.memory_space<vmem>>, %arg2: memref<8x216xbf16, #tpu.memory_space<vmem>>, %arg3: memref<8x1xf32, #tpu.memory_space<vmem>>, %arg4: memref<8x512xf32, #tpu.memory_space<vmem>>) attributes {dimension_semantics = [#tpu.dimension_semantics<parallel>], iteration_bounds = array<i64: 2>, scalar_prefetch = 0 : i64, scratch_operands = 0 : i64, tpu.core_type = #tpu.core_type<tc>, window_params = [{transform_indices = @transform_0, window_bounds = array<i64: 216, 512>}, {pipeline_mode = #tpu.pipeline_mode<synchronous>, transform_indices = @transform_1, window_bounds = array<i64: 8, 216>}, {pipeline_mode = #tpu.pipeline_mode<synchronous>, transform_indices = @transform_2, window_bounds = array<i64: 8, 1>}, {transform_indices = @transform_3, window_bounds = array<i64: 8, 512>}]} {
    %c0 = arith.constant 0 : index
    %c0_0 = arith.constant 0 : index
    %0 = vector.load %arg2[%c0, %c0_0] : memref<8x216xbf16, #tpu.memory_space<vmem>>, vector<8x216xbf16>
    %c0_1 = arith.constant 0 : index
    %c0_2 = arith.constant 0 : index
    %1 = vector.load %arg1[%c0_1, %c0_2] : memref<216x512xbf16, #tpu.memory_space<vmem>>, vector<216x512xbf16>
    %cst = arith.constant dense<0.000000e+00> : vector<8x512xf32>
    %2 = tpu.matmul %0, %1, %cst {dimension_numbers = #tpu.dot_dimension_numbers<[1], [0], [0], [1], [0, 0, 1, 1], [], []>} : vector<8x216xbf16>, vector<216x512xbf16>, vector<8x512xf32> -> vector<8x512xf32>
    %c0_3 = arith.constant 0 : index
    %c0_4 = arith.constant 0 : index
    %3 = vector.load %arg3[%c0_3, %c0_4] : memref<8x1xf32, #tpu.memory_space<vmem>>, vector<8x1xf32>
    %4 = vector.broadcast %3 : vector<8x1xf32> to vector<8x512xf32>
    %5 = arith.addf %2, %4 : vector<8x512xf32>
    %c0_5 = arith.constant 0 : index
    %c0_6 = arith.constant 0 : index
    %6 = vector.load %arg4[%c0_5, %c0_6] : memref<8x512xf32, #tpu.memory_space<vmem>>, vector<8x512xf32>
    tpu.vector_store %arg4[%c0_5, %c0_6], %5 {strides = array<i32>} : memref<8x512xf32, #tpu.memory_space<vmem>>, vector<8x512xf32>,
    return
  }
  func.func @transform_0(%arg0: i32) -> (i32, i32) {
    %c0_i32 = arith.constant 0 : i32
    %c0_i32_0 = arith.constant 0 : i32
    return %c0_i32, %arg0 : i32, i32
  }
  func.func @transform_1(%arg0: i32) -> (i32, i32) {
    %c0_i32 = arith.constant 0 : i32
    %c0_i32_0 = arith.constant 0 : i32
    %c0_i32_1 = arith.constant 0 : i32
    return %c0_i32, %c0_i32_0 : i32, i32
  }
  func.func @transform_2(%arg0: i32) -> (i32, i32) {
    %c0_i32 = arith.constant 0 : i32
    %c0_i32_0 = arith.constant 0 : i32
    %c0_i32_1 = arith.constant 0 : i32
    return %c0_i32, %c0_i32_0 : i32, i32
  }
  func.func @transform_3(%arg0: i32) -> (i32, i32) {
    %c0_i32 = arith.constant 0 : i32
    %c0_i32_0 = arith.constant 0 : i32
    return %c0_i32, %arg0 : i32, i32
  }
}

</mosaic_0001>

<llo_original>
// kernel: decoder_forward.4
$region0: #{decoder_forward.4}
  #allocation0 [shape = 'u32[]', space=smem, size = 0x4, offset = 0x4, fixed_abs, tag = 'smem constant byte address 0x4 - core index']
  #allocation1 [shape = 'u32[144,128]{1,0:T(1,128)}', space=vmem, size = 0x12000, scoped, tag = 'internal scratch']
  %s0 = inlined_call_operand.vmem [shape: bf16[108,128], index: 0, kind: input, shape index: {}]
  %s1 = inlined_call_operand.vmem [shape: bf16[8,108], index: 1, kind: input, shape index: {}]
  %s2 = inlined_call_operand.vmem [shape: bf16[4,8], index: 2, kind: input, shape index: {}]
  %s3 = inlined_call_operand.vmem [shape: f32[4,128], index: 3, kind: input, shape index: {}]
  %s4 = inlined_call_operand.vmem [shape: f32[4,128], index: 4, kind: output, shape index: {}]
  %s5 = sld [smem:[#allocation0]]
  $region26: #{decoder_forward.4} parent=0
    _
  %s7 = ssub.s32 1, %s5
  %s8 = scalar_select 0, %s7, %s5
  // Predicated region
  $region2: #{decoder_forward.4} parent=0 // pred_check
    _
  $region3: #{decoder_forward.4} parent=0 // pred_check_branch
    %10 = sbr.rel (0) target = $region5
  $region4: #{decoder_forward.4} parent=0 // pred_region
    _
  $region5: #{decoder_forward.4} parent=0 // pred_fallthru
    _
  // Predicated region
  $region6: #{decoder_forward.4} parent=0 // pred_check
    _
  $region7: #{decoder_forward.4} parent=0 // pred_check_branch
    %12 = sbr.rel (0) target = $region9
  $region8: #{decoder_forward.4} parent=0 // pred_region
    _
  $region9: #{decoder_forward.4} parent=0 // pred_fallthru
    _
  // Predicated region
  $region10: #{decoder_forward.4} parent=0 // pred_check
    _
  $region11: #{decoder_forward.4} parent=0 // pred_check_branch
    %14 = sbr.rel (0) target = $region13
  $region12: #{decoder_forward.4} parent=0 // pred_region
    _
  $region13: #{decoder_forward.4} parent=0 // pred_fallthru
    _
  // Predicated region
  $region14: #{decoder_forward.4} parent=0 // pred_check
    _
  $region15: #{decoder_forward.4} parent=0 // pred_check_branch
    %16 = sbr.rel (0) target = $region17
  $region16: #{decoder_forward.4} parent=0 // pred_region
    _
  $region17: #{decoder_forward.4} parent=0 // pred_fallthru
    _
  %v18 = vld [vmem:[%s0] sm:$0xf]
  %v19 = vld [vmem:[%s0 + $0x4] sm:$0xf]
  %v20 = vld [vmem:[%s0 + $0x8] sm:$0xf]
  %v21 = vld [vmem:[%s0 + $0xc] sm:$0xf]
  %v22 = vld [vmem:[%s0 + $0x10] sm:$0xf]
  %v23 = vld [vmem:[%s0 + $0x14] sm:$0xf]
  %v24 = vld [vmem:[%s0 + $0x18] sm:$0xf]
  %v25 = vld [vmem:[%s0 + $0x1c] sm:$0xf]
  %v26 = vld [vmem:[%s0 + $0x20] sm:$0xf]
  %v27 = vld [vmem:[%s0 + $0x24] sm:$0xf]
  %v28 = vld [vmem:[%s0 + $0x28] sm:$0xf]
  %v29 = vld [vmem:[%s0 + $0x2c] sm:$0xf]
  %v30 = vld [vmem:[%s0 + $0x30] sm:$0xf]
  %v31 = vld [vmem:[%s0 + $0x34] sm:$0x3]
  %v32 = vmax.bf16 %v18, 0
  %v33 = vmax.bf16 %v19, 0
  %v34 = vmax.bf16 %v20, 0
  %v35 = vmax.bf16 %v21, 0
  %v36 = vmax.bf16 %v22, 0
  %v37 = vmax.bf16 %v23, 0
  %v38 = vmax.bf16 %v24, 0
  %v39 = vmax.bf16 %v25, 0
  %v40 = vmax.bf16 %v26, 0
  %v41 = vmax.bf16 %v27, 0
  %v42 = vmax.bf16 %v28, 0
  %v43 = vmax.bf16 %v29, 0
  %v44 = vmax.bf16 %v30, 0
  %v45 = vmax.bf16 %v31, 0
  %v46 = vld [vmem:[%s1] sm:$0xf]
  %v61 = vunpack.c.l.b16 %v32
  %v62 = vunpack.c.l.b16 %v33
  %v63 = vunpack.c.l.b16 %v34
  %v64 = vunpack.c.l.b16 %v35
  %v65 = vunpack.c.l.b16 %v36
  %v66 = vunpack.c.l.b16 %v37
  %v67 = vunpack.c.l.b16 %v38
  %v68 = vunpack.c.l.b16 %v39
  %v69 = vunpack.c.l.b16 %v40
  %v70 = vunpack.c.l.b16 %v41
  %v71 = vunpack.c.l.b16 %v42
  %v72 = vunpack.c.l.b16 %v43
  %v73 = vunpack.c.l.b16 %v44
  %v74 = vunpack.c.l.b16 %v45
  %v75 = vpack.c.b16 %v62, %v61
  %v76 = vpack.c.b16 %v64, %v63
  %v77 = vpack.c.b16 %v66, %v65
  %v78 = vpack.c.b16 %v68, %v67
  %v79 = vpack.c.b16 %v70, %v69
  %v80 = vpack.c.b16 %v72, %v71
  %v81 = vpack.c.b16 %v74, %v73
  %vm88 = vcmask 883712
  %v90 = vsel %vm88, %v46, 0
  %vm92 = vcmask 1045504
  %v94 = vsel %vm92, %v81, 0
  %96 = vmatprep.subr.bf16.mxu0 0
  %97 = vmatpush1.bf16.msra.mxu0 %v75
  %98 = vmatprep.subr.bf16.mxu0 0
  %99 = vmatpush1.bf16.msra.mxu0 %v76
  %100 = vmatprep.subr.bf16.mxu0 0
  %101 = vmatpush1.bf16.msra.mxu0 %v77
  %102 = vmatprep.subr.bf16.mxu0 0
  %103 = vmatpush1.bf16.msra.mxu0 %v78
  %104 = vmatprep.subr.bf16.mxu0 0
  %105 = vmatpush1.bf16.msra.mxu0 %v79
  %106 = vmatprep.subr.bf16.mxu0 0
  %107 = vmatpush1.bf16.msra.mxu0 %v80
  %108 = vmatprep.subr.bf16.mxu0 0
  %109 = vmatpush1.bf16.msra.mxu0 %v94
  %110 = vmatprep.subr.bf16.mxu0 0
  %111 = vmatpush1.bf16.msra.mxu0 0
  %112 = vmatprep.subr.bf16.mxu0 0
  %113 = vmatpush1.bf16.msra.mxu0 0
  %114 = vmatprep.subr.bf16.mxu0 0
  %115 = vmatpush1.bf16.msra.mxu0 0
  %116 = vmatprep.subr.bf16.mxu0 0
  %117 = vmatpush1.bf16.msra.mxu0 0
  %118 = vmatprep.subr.bf16.mxu0 0
  %119 = vmatpush1.bf16.msra.mxu0 0
  %120 = vmatprep.subr.bf16.mxu0 0
  %121 = vmatpush1.bf16.msra.mxu0 0
  %122 = vmatprep.subr.bf16.mxu0 0
  %123 = vmatpush1.bf16.msra.mxu0 0
  %124 = vmatprep.subr.bf16.mxu0 0
  %125 = vmatpush1.bf16.msra.mxu0 0
  %126 = vmatprep.subr.bf16.mxu0 0
  %127 = vmatpush1.bf16.msra.mxu0 0
  %128 = vmatprep.mubr.bf16.mxu0 0
  %129 = vmatmul.mubr.bf16.gmra.mrb[0].mxu0 %v90
  %v130 = vpop.f32.mrb[0].mxu0
  %v131 = vadd.f32 0.0, %v130
  %v132 = vpop.f32.mrb[0].mxu0
  %v133 = vpop.f32.mrb[0].mxu0
  %v134 = vpop.f32.mrb[0].mxu0
  %135 = vdwg.mxu0
  %v136 = vmax.f32 %v131, 0.0
  %v137 = vpack.c.bf16 %v136, %v136
  %v138 = vld [vmem:[%s2] sm:$0x3]
  %vm139 = vcmask 64512
  %v141 = vsel %vm139, %v138, 0
  %vm143 = vcmask 1043456
  %v145 = vsel %vm143, %v137, 0
  %147 = vmatprep.subr.bf16.mxu0 0
  %148 = vmatpush1.bf16.msra.mxu0 %v145
  %149 = vmatprep.subr.bf16.mxu0 0
  %150 = vmatpush1.bf16.msra.mxu0 0
  %151 = vmatprep.subr.bf16.mxu0 0
  %152 = vmatpush1.bf16.msra.mxu0 0
  %153 = vmatprep.subr.bf16.mxu0 0
  %154 = vmatpush1.bf16.msra.mxu0 0
  %155 = vmatprep.subr.bf16.mxu0 0
  %156 = vmatpush1.bf16.msra.mxu0 0
  %157 = vmatprep.subr.bf16.mxu0 0
  %158 = vmatpush1.bf16.msra.mxu0 0
  %159 = vmatprep.subr.bf16.mxu0 0
  %160 = vmatpush1.bf16.msra.mxu0 0
  %161 = vmatprep.subr.bf16.mxu0 0
  %162 = vmatpush1.bf16.msra.mxu0 0
  %163 = vmatprep.subr.bf16.mxu0 0
  %164 = vmatpush1.bf16.msra.mxu0 0
  %165 = vmatprep.subr.bf16.mxu0 0
  %166 = vmatpush1.bf16.msra.mxu0 0
  %167 = vmatprep.subr.bf16.mxu0 0
  %168 = vmatpush1.bf16.msra.mxu0 0
  %169 = vmatprep.subr.bf16.mxu0 0
  %170 = vmatpush1.bf16.msra.mxu0 0
  %171 = vmatprep.subr.bf16.mxu0 0
  %172 = vmatpush1.bf16.msra.mxu0 0
  %173 = vmatprep.subr.bf16.mxu0 0
  %174 = vmatpush1.bf16.msra.mxu0 0
  %175 = vmatprep.subr.bf16.mxu0 0
  %176 = vmatpush1.bf16.msra.mxu0 0
  %177 = vmatprep.subr.bf16.mxu0 0
  %178 = vmatpush1.bf16.msra.mxu0 0
  %179 = vmatprep.mubr.bf16.mxu0 0
  %180 = vmatmul.mubr.bf16.gmra.mrb[0].mxu0 %v141
  %v181 = vpop.f32.mrb[0].mxu0
  %v182 = vadd.f32 0.0, %v181
  %v183 = vpop.f32.mrb[0].mxu0
  %v184 = vpop.f32.mrb[0].mxu0
  %v185 = vpop.f32.mrb[0].mxu0
  %186 = vdwg.mxu0
  %v187 = vld [vmem:[%s3] sm:$0xf]
  %v188 = vadd.f32 %v187, %v182
  %189 = vst [vmem:[%s4] sm:$0xf] %v188
  // Predicated region
  $region18: #{decoder_forward.4} parent=0 // pred_check
    _
  $region19: #{decoder_forward.4} parent=0 // pred_check_branch
    %191 = sbr.rel (0) target = $region21
  $region20: #{decoder_forward.4} parent=0 // pred_region
    _
  $region21: #{decoder_forward.4} parent=0 // pred_fallthru
    _
  // Predicated region
  $region22: #{decoder_forward.4} parent=0 // pred_check
    _
  $region23: #{decoder_forward.4} parent=0 // pred_check_branch
    %193 = sbr.rel (0) target = $region25
  $region24: #{decoder_forward.4} parent=0 // pred_region
    _
  $region25: #{decoder_forward.4} parent=0 // pred_fallthru
    _

// kernel: tile.10
$region0: #{tile.10}
  #allocation0 [shape = 's32[1]{0}', space=sflag, size = 0x4, scoped, tag = 'scoped memory for tile.10']
  %s0 = inlined_call_operand.vmem [shape: f32[8], index: 0, kind: input, shape index: {}]
  %s1 = inlined_call_operand.vmem [shape: f32[8,1,1,8], index: 1, kind: output, shape index: {}]
  // Predicated region
  $region2: #{tile.10} parent=0 // pred_check
    _
  $region3: #{tile.10} parent=0 // pred_check_branch
    %3 = sbr.rel (0) target = $region5
  $region4: #{tile.10} parent=0 // pred_region
    _
  $region5: #{tile.10} parent=0 // pred_fallthru
    _
  %v4 = vld [vmem:[%s0] ss:$0 sm:$0xff]
  %5 = vst [vmem:[%s1] sm:$0xff] %v4

// kernel: tile.0
$region0: #{tile.0}
  %s0 = inlined_call_operand.vmem [shape: f32[8,1,1,8], index: 0, kind: input, shape index: {}]
  %s1 = inlined_call_operand.vmem [shape: f32[64,1], index: 1, kind: output, shape index: {}]
  %v2 = vld [vmem:[%s0] sm:$0xff]
  %vm3 = vcmask 7168
  %4 = vst.msk [vmem:[%s1] ss:$8 sm:$0xf] %vm3, %v2
  %5 = vst.msk [vmem:[%s1] ss:$8 sm:$0xf0] %vm3, %v2
  %v6 = vld [vmem:[%s0] sm:$0xff]
  %7 = vrot.lane.b32.xlu0 %v6, 127
  %v8 = vpop.permute.xlu0 %7
  %vm9 = vcmask 7168
  %s10 = scalar_lea.vmem %s1, 1
  %11 = vst.msk [vmem:[%s10] ss:$8 sm:$0xf] %vm9, %v8
  %s12 = scalar_lea.vmem %s1, 1
  %13 = vst.msk [vmem:[%s12] ss:$8 sm:$0xf0] %vm9, %v8
  %v14 = vld [vmem:[%s0] sm:$0xff]
  %15 = vrot.lane.b32.xlu0 %v14, 126
  %v16 = vpop.permute.xlu0 %15
  %vm17 = vcmask 7168
  %s18 = scalar_lea.vmem %s1, 2
  %19 = vst.msk [vmem:[%s18] ss:$8 sm:$0xf] %vm17, %v16
  %s20 = scalar_lea.vmem %s1, 2
  %21 = vst.msk [vmem:[%s20] ss:$8 sm:$0xf0] %vm17, %v16
  %v22 = vld [vmem:[%s0] sm:$0xff]
  %23 = vrot.lane.b32.xlu0 %v22, 125
  %v24 = vpop.permute.xlu0 %23
  %vm25 = vcmask 7168
  %s26 = scalar_lea.vmem %s1, 3
  %27 = vst.msk [vmem:[%s26] ss:$8 sm:$0xf] %vm25, %v24
  %s28 = scalar_lea.vmem %s1, 3
  %29 = vst.msk [vmem:[%s28] ss:$8 sm:$0xf0] %vm25, %v24
  %v30 = vld [vmem:[%s0] sm:$0xff]
  %31 = vrot.lane.b32.xlu0 %v30, 124
  %v32 = vpop.permute.xlu0 %31
  %vm33 = vcmask 7168
  %s34 = scalar_lea.vmem %s1, 4
  %35 = vst.msk [vmem:[%s34] ss:$8 sm:$0xf] %vm33, %v32
  %s36 = scalar_lea.vmem %s1, 4
  %37 = vst.msk [vmem:[%s36] ss:$8 sm:$0xf0] %vm33, %v32
  %v38 = vld [vmem:[%s0] sm:$0xff]
  %39 = vrot.lane.b32.xlu0 %v38, 123
  %v40 = vpop.permute.xlu0 %39
  %vm41 = vcmask 7168
  %s42 = scalar_lea.vmem %s1, 5
  %43 = vst.msk [vmem:[%s42] ss:$8 sm:$0xf] %vm41, %v40
  %s44 = scalar_lea.vmem %s1, 5
  %45 = vst.msk [vmem:[%s44] ss:$8 sm:$0xf0] %vm41, %v40
  %v46 = vld [vmem:[%s0] sm:$0xff]
  %47 = vrot.lane.b32.xlu0 %v46, 122
  %v48 = vpop.permute.xlu0 %47
  %vm49 = vcmask 7168
  %s50 = scalar_lea.vmem %s1, 6
  %51 = vst.msk [vmem:[%s50] ss:$8 sm:$0xf] %vm49, %v48
  %s52 = scalar_lea.vmem %s1, 6
  %53 = vst.msk [vmem:[%s52] ss:$8 sm:$0xf0] %vm49, %v48
  %v54 = vld [vmem:[%s0] sm:$0xff]
  %55 = vrot.lane.b32.xlu0 %v54, 121
  %v56 = vpop.permute.xlu0 %55
  %vm57 = vcmask 7168
  %s58 = scalar_lea.vmem %s1, 7
  %59 = vst.msk [vmem:[%s58] ss:$8 sm:$0xf] %vm57, %v56
  %s60 = scalar_lea.vmem %s1, 7
  %61 = vst.msk [vmem:[%s60] ss:$8 sm:$0xf0] %vm57, %v56

// kernel: decoder_forward.6
$region0: #{decoder_forward.6}
  #allocation0 [shape = 'u32[]', space=smem, size = 0x4, offset = 0x4, fixed_abs, tag = 'smem constant byte address 0x4 - core index']
  #allocation1 [shape = 'u32[144,128]{1,0:T(1,128)}', space=vmem, size = 0x12000, scoped, tag = 'internal scratch']
  %s0 = inlined_call_operand.vmem [shape: bf16[108,128], index: 0, kind: input, shape index: {}]
  %s1 = inlined_call_operand.vmem [shape: bf16[64,108], index: 1, kind: input, shape index: {}]
  %s2 = inlined_call_operand.vmem [shape: f32[64,1], index: 2, kind: input, shape index: {}]
  %s3 = inlined_call_operand.vmem [shape: f32[64,128], index: 3, kind: output, shape index: {}]
  %s4 = sld [smem:[#allocation0]]
  $region22: #{decoder_forward.6} parent=0
    _
  %s6 = ssub.s32 1, %s4
  %s7 = scalar_select 0, %s6, %s4
  // Predicated region
  $region2: #{decoder_forward.6} parent=0 // pred_check
    _
  $region3: #{decoder_forward.6} parent=0 // pred_check_branch
    %9 = sbr.rel (0) target = $region5
  $region4: #{decoder_forward.6} parent=0 // pred_region
    _
  $region5: #{decoder_forward.6} parent=0 // pred_fallthru
    _
  // Predicated region
  $region6: #{decoder_forward.6} parent=0 // pred_check
    _
  $region7: #{decoder_forward.6} parent=0 // pred_check_branch
    %11 = sbr.rel (0) target = $region9
  $region8: #{decoder_forward.6} parent=0 // pred_region
    _
  $region9: #{decoder_forward.6} parent=0 // pred_fallthru
    _
  // Predicated region
  $region10: #{decoder_forward.6} parent=0 // pred_check
    _
  $region11: #{decoder_forward.6} parent=0 // pred_check_branch
    %13 = sbr.rel (0) target = $region13
  $region12: #{decoder_forward.6} parent=0 // pred_region
    _
  $region13: #{decoder_forward.6} parent=0 // pred_fallthru
    _
  %v15 = vld [vmem:[%s1] sm:$0xf]
  %v16 = vld [vmem:[%s1 + $0x4] sm:$0xf]
  %v17 = vld [vmem:[%s1 + $0x8] sm:$0xf]
  %v18 = vld [vmem:[%s1 + $0xc] sm:$0xf]
  %v19 = vld [vmem:[%s1 + $0x10] sm:$0xf]
  %v20 = vld [vmem:[%s1 + $0x14] sm:$0xf]
  %v21 = vld [vmem:[%s1 + $0x18] sm:$0xf]
  %v22 = vld [vmem:[%s1 + $0x1c] sm:$0xf]
  %v23 = vld [vmem:[%s0] sm:$0xf]
  %v24 = vld [vmem:[%s0 + $0x4] sm:$0xf]
  %v25 = vld [vmem:[%s0 + $0x8] sm:$0xf]
  %v26 = vld [vmem:[%s0 + $0xc] sm:$0xf]
  %v27 = vld [vmem:[%s0 + $0x10] sm:$0xf]
  %v28 = vld [vmem:[%s0 + $0x14] sm:$0xf]
  %v29 = vld [vmem:[%s0 + $0x18] sm:$0xf]
  %v30 = vld [vmem:[%s0 + $0x1c] sm:$0xf]
  %v31 = vld [vmem:[%s0 + $0x20] sm:$0xf]
  %v32 = vld [vmem:[%s0 + $0x24] sm:$0xf]
  %v33 = vld [vmem:[%s0 + $0x28] sm:$0xf]
  %v34 = vld [vmem:[%s0 + $0x2c] sm:$0xf]
  %v35 = vld [vmem:[%s0 + $0x30] sm:$0xf]
  %v36 = vld [vmem:[%s0 + $0x34] sm:$0x3]
  %v37 = vld [vmem:[%s2] sm:$0xff]
  %v38 = vld [vmem:[%s2 + $0x8] sm:$0xff]
  %v39 = vld [vmem:[%s2 + $0x10] sm:$0xff]
  %v40 = vld [vmem:[%s2 + $0x18] sm:$0xff]
  %v41 = vld [vmem:[%s2 + $0x20] sm:$0xff]
  %v42 = vld [vmem:[%s2 + $0x28] sm:$0xff]
  %v43 = vld [vmem:[%s2 + $0x30] sm:$0xff]
  %v44 = vld [vmem:[%s2 + $0x38] sm:$0xff]
  %46 = vset.pattern.permute.xlu0 0
  %47 = vperm.xlu0 %46, %v37
  %v48 = vpop.permute.xlu0 %47
  %51 = vset.pattern.permute.xlu0 0
  %52 = vperm.xlu0 %51, %v38
  %v53 = vpop.permute.xlu0 %52
  %56 = vset.pattern.permute.xlu0 0
  %57 = vperm.xlu0 %56, %v39
  %v58 = vpop.permute.xlu0 %57
  %61 = vset.pattern.permute.xlu0 0
  %62 = vperm.xlu0 %61, %v40
  %v63 = vpop.permute.xlu0 %62
  %66 = vset.pattern.permute.xlu0 0
  %67 = vperm.xlu0 %66, %v41
  %v68 = vpop.permute.xlu0 %67
  %71 = vset.pattern.permute.xlu0 0
  %72 = vperm.xlu0 %71, %v42
  %v73 = vpop.permute.xlu0 %72
  %76 = vset.pattern.permute.xlu0 0
  %77 = vperm.xlu0 %76, %v43
  %v78 = vpop.permute.xlu0 %77
  %81 = vset.pattern.permute.xlu0 0
  %82 = vperm.xlu0 %81, %v44
  %v83 = vpop.permute.xlu0 %82
  %v93 = vunpack.c.l.b16 %v15
  %v94 = vunpack.c.l.b16 %v16
  %v95 = vunpack.c.l.b16 %v17
  %v96 = vunpack.c.l.b16 %v18
  %v97 = vunpack.c.l.b16 %v19
  %v98 = vunpack.c.l.b16 %v20
  %v99 = vunpack.c.l.b16 %v21
  %v100 = vunpack.c.l.b16 %v22
  %v101 = vpack.c.b16 %v94, %v93
  %v102 = vpack.c.b16 %v96, %v95
  %v103 = vpack.c.b16 %v98, %v97
  %v104 = vpack.c.b16 %v100, %v99
  %v119 = vunpack.c.l.b16 %v23
  %v120 = vunpack.c.l.b16 %v24
  %v121 = vunpack.c.l.b16 %v25
  %v122 = vunpack.c.l.b16 %v26
  %v123 = vunpack.c.l.b16 %v27
  %v124 = vunpack.c.l.b16 %v28
  %v125 = vunpack.c.l.b16 %v29
  %v126 = vunpack.c.l.b16 %v30
  %v127 = vunpack.c.l.b16 %v31
  %v128 = vunpack.c.l.b16 %v32
  %v129 = vunpack.c.l.b16 %v33
  %v130 = vunpack.c.l.b16 %v34
  %v131 = vunpack.c.l.b16 %v35
  %v132 = vunpack.c.l.b16 %v36
  %v133 = vpack.c.b16 %v120, %v119
  %v134 = vpack.c.b16 %v122, %v121
  %v135 = vpack.c.b16 %v124, %v123
  %v136 = vpack.c.b16 %v126, %v125
  %v137 = vpack.c.b16 %v128, %v127
  %v138 = vpack.c.b16 %v130, %v129
  %v139 = vpack.c.b16 %v132, %v131
  %vm146 = vcmask 883712
  %v148 = vsel %vm146, %v101, 0
  %v151 = vsel %vm146, %v102, 0
  %v154 = vsel %vm146, %v103, 0
  %v157 = vsel %vm146, %v104, 0
  %vm159 = vcmask 1045504
  %v161 = vsel %vm159, %v139, 0
  %163 = vmatprep.subr.bf16.mxu0 0
  %164 = vmatpush1.bf16.msra.mxu0 %v133
  %165 = vmatprep.subr.bf16.mxu0 0
  %166 = vmatpush1.bf16.msra.mxu0 %v134
  %167 = vmatprep.subr.bf16.mxu0 0
  %168 = vmatpush1.bf16.msra.mxu0 %v135
  %169 = vmatprep.subr.bf16.mxu0 0
  %170 = vmatpush1.bf16.msra.mxu0 %v136
  %171 = vmatprep.subr.bf16.mxu0 0
  %172 = vmatpush1.bf16.msra.mxu0 %v137
  %173 = vmatprep.subr.bf16.mxu0 0
  %174 = vmatpush1.bf16.msra.mxu0 %v138
  %175 = vmatprep.subr.bf16.mxu0 0
  %176 = vmatpush1.bf16.msra.mxu0 %v161
  %177 = vmatprep.subr.bf16.mxu0 0
  %178 = vmatpush1.bf16.msra.mxu0 0
  %179 = vmatprep.subr.bf16.mxu0 0
  %180 = vmatpush1.bf16.msra.mxu0 0
  %181 = vmatprep.subr.bf16.mxu0 0
  %182 = vmatpush1.bf16.msra.mxu0 0
  %183 = vmatprep.subr.bf16.mxu0 0
  %184 = vmatpush1.bf16.msra.mxu0 0
  %185 = vmatprep.subr.bf16.mxu0 0
  %186 = vmatpush1.bf16.msra.mxu0 0
  %187 = vmatprep.subr.bf16.mxu0 0
  %188 = vmatpush1.bf16.msra.mxu0 0
  %189 = vmatprep.subr.bf16.mxu0 0
  %190 = vmatpush1.bf16.msra.mxu0 0
  %191 = vmatprep.subr.bf16.mxu0 0
  %192 = vmatpush1.bf16.msra.mxu0 0
  %193 = vmatprep.subr.bf16.mxu0 0
  %194 = vmatpush1.bf16.msra.mxu0 0
  %195 = vmatprep.mubr.bf16.mxu0 0
  %196 = vmatmul.mubr.bf16.gmra.mrb[0].mxu0 %v148
  %v197 = vpop.f32.mrb[0].mxu0
  %v198 = vadd.f32 %v48, %v197
  %v199 = vpop.f32.mrb[0].mxu0
  %v200 = vpop.f32.mrb[0].mxu0
  %v201 = vadd.f32 %v53, %v200
  %v202 = vpop.f32.mrb[0].mxu0
  %203 = vmatprep.mubr.bf16.mxu0 0
  %204 = vmatmul.mubr.bf16.gmra.mrb[0].mxu0 %v151
  %v205 = vpop.f32.mrb[0].mxu0
  %v206 = vadd.f32 %v58, %v205
  %v207 = vpop.f32.mrb[0].mxu0
  %v208 = vpop.f32.mrb[0].mxu0
  %v209 = vadd.f32 %v63, %v208
  %v210 = vpop.f32.mrb[0].mxu0
  %211 = vmatprep.mubr.bf16.mxu0 0
  %212 = vmatmul.mubr.bf16.gmra.mrb[0].mxu0 %v154
  %v213 = vpop.f32.mrb[0].mxu0
  %v214 = vadd.f32 %v68, %v213
  %v215 = vpop.f32.mrb[0].mxu0
  %v216 = vpop.f32.mrb[0].mxu0
  %v217 = vadd.f32 %v73, %v216
  %v218 = vpop.f32.mrb[0].mxu0
  %219 = vmatprep.mubr.bf16.mxu0 0
  %220 = vmatmul.mubr.bf16.gmra.mrb[0].mxu0 %v157
  %v221 = vpop.f32.mrb[0].mxu0
  %v222 = vadd.f32 %v78, %v221
  %v223 = vpop.f32.mrb[0].mxu0
  %v224 = vpop.f32.mrb[0].mxu0
  %v225 = vadd.f32 %v83, %v224
  %v226 = vpop.f32.mrb[0].mxu0
  %227 = vdwg.mxu0
  %v228 = vmax.f32 %v198, 0.0
  %v229 = vmax.f32 %v201, 0.0
  %v230 = vmax.f32 %v206, 0.0
  %v231 = vmax.f32 %v209, 0.0
  %v232 = vmax.f32 %v214, 0.0
  %v233 = vmax.f32 %v217, 0.0
  %v234 = vmax.f32 %v222, 0.0
  %v235 = vmax.f32 %v225, 0.0
  %236 = vst [vmem:[%s3] sm:$0xff] %v228
  %237 = vst [vmem:[%s3 + $0x8] sm:$0xff] %v229
  %238 = vst [vmem:[%s3 + $0x10] sm:$0xff] %v230
  %239 = vst [vmem:[%s3 + $0x18] sm:$0xff] %v231
  %240 = vst [vmem:[%s3 + $0x20] sm:$0xff] %v232
  %241 = vst [vmem:[%s3 + $0x28] sm:$0xff] %v233
  %242 = vst [vmem:[%s3 + $0x30] sm:$0xff] %v234
  %243 = vst [vmem:[%s3 + $0x38] sm:$0xff] %v235
  // Predicated region
  $region14: #{decoder_forward.6} parent=0 // pred_check
    _
  $region15: #{decoder_forward.6} parent=0 // pred_check_branch
    %245 = sbr.rel (0) target = $region17
  $region16: #{decoder_forward.6} parent=0 // pred_region
    _
  $region17: #{decoder_forward.6} parent=0 // pred_fallthru
    _
  // Predicated region
  $region18: #{decoder_forward.6} parent=0 // pred_check
    _
  $region19: #{decoder_forward.6} parent=0 // pred_check_branch
    %247 = sbr.rel (0) target = $region21
  $region20: #{decoder_forward.6} parent=0 // pred_region
    _
  $region21: #{decoder_forward.6} parent=0 // pred_fallthru
    _

// kernel: decoder_forward.7
$region0: #{decoder_forward.7}
  #allocation0 [shape = 'u32[]', space=smem, size = 0x4, offset = 0x4, fixed_abs, tag = 'smem constant byte address 0x4 - core index']
  #allocation1 [shape = 'u32[144,128]{1,0:T(1,128)}', space=vmem, size = 0x12000, scoped, tag = 'internal scratch']
  %s0 = inlined_call_operand.vmem [shape: bf16[216,1024], index: 0, kind: input, shape index: {}]
  %s1 = inlined_call_operand.vmem [shape: bf16[8,216], index: 1, kind: input, shape index: {}]
  %s2 = inlined_call_operand.vmem [shape: f32[8,1], index: 2, kind: input, shape index: {}]
  %s3 = inlined_call_operand.vmem [shape: f32[8,1024], index: 3, kind: output, shape index: {}]
  %s4 = sld [smem:[#allocation0]]
  $region68: #{decoder_forward.7} parent=0
    _
  %s6 = ssub.s32 1, %s4
  %s7 = scalar_select 0, %s6, %s4
  $region1: #{decoder_forward.7} parent=0
    #allocation2 [shape = 'u8[442368]{0}', space=vmem, size = 0x6c000, scoped, tag = 'input window, operand 0']
    loop: start=0, step=1, limit=4
    $region2: #{decoder_forward.7} parent=1 // loop_pre_header
      _
    $region3: #{decoder_forward.7} parent=1 // loop_header
      %s9 = sphi 0, %s13
      %p10 = scmp.ge.s32.totalorder %s9, 4
      %s19 = sphi 0, %s21
      %s22 = sphi 0, %s19
      %s23 = sphi 0, %s22
      %s39 = sphi 0, %s23
      %s43 = sphi 0, %s43
      %s45 = sphi 0, %s43
      %s46 = sphi 0, %s45
      %s60 = sphi 0, %s46
      %s64 = sphi 0, %s64
      %s66 = sphi 0, %s64
      %s67 = sphi 0, %s66
      %s81 = sphi 0, %s67
      %s87 = sphi 0, %s89
      %s90 = sphi 0, %s87
      %s91 = sphi 0, %s90
      %s107 = sphi 0, %s91
    $region4: #{decoder_forward.7} parent=1 // loop_header_branch
      %12 = sbr.rel (%p10) target = $region8
    $region5: #{decoder_forward.7} parent=1 // loop_body
      %s14 = ssub.s32 %s9, 1
      %s15 = ssub.s32 %s9, 2
      %s16 = sadd.s32 %s9, 1
      %s17 = ssub.s32 %s9, %s16
      %p18 = scmp.eq.s32.totalorder %s17, 0
      %s20 = sadd.s32 %s19, 1
      %s21 = scalar_select %p18, %s19, %s20
      %p24 = pneg %p18
      %p25 = scmp.eq.s32.totalorder %s9, 1
      %p26 = por %p24, %p25
      %p27 = scmp.ne.s32.totalorder %s19, %s22
      %p28 = scmp.eq.s32.totalorder %s9, 0
      %p29 = por %p27, %p28
      %p30 = scmp.ne.s32.totalorder %s19, %s22
      %p31 = scmp.eq.s32.totalorder %s14, 1
      %p32 = por %p30, %p31
      %p33 = scmp.ne.s32.totalorder %s22, %s23
      %p34 = scmp.eq.s32.totalorder %s14, 0
      %p35 = por %p33, %p34
      %p36 = scmp.ne.s32.totalorder %s22, %s23
      %p37 = scmp.eq.s32.totalorder %s15, 1
      %p38 = por %p36, %p37
      %p40 = scmp.ne.s32.totalorder %s23, %s39
      %p41 = scmp.eq.s32.totalorder %s15, 0
      %p42 = por %p40, %p41
      %s44 = sadd.s32 %s43, 1
      %p47 = scmp.eq.s32.totalorder %s9, 1
      %p48 = scmp.ne.s32.totalorder %s43, %s45
      %p49 = scmp.eq.s32.totalorder %s9, 0
      %p50 = por %p48, %p49
      %p51 = scmp.ne.s32.totalorder %s43, %s45
      %p52 = scmp.eq.s32.totalorder %s14, 1
      %p53 = por %p51, %p52
      %p54 = scmp.ne.s32.totalorder %s45, %s46
      %p55 = scmp.eq.s32.totalorder %s14, 0
      %p56 = por %p54, %p55
      %p57 = scmp.ne.s32.totalorder %s45, %s46
      %p58 = scmp.eq.s32.totalorder %s15, 1
      %p59 = por %p57, %p58
      %p61 = scmp.ne.s32.totalorder %s46, %s60
      %p62 = scmp.eq.s32.totalorder %s15, 0
      %p63 = por %p61, %p62
      %s65 = sadd.s32 %s64, 1
      %p68 = scmp.eq.s32.totalorder %s9, 1
      %p69 = scmp.ne.s32.totalorder %s64, %s66
      %p70 = scmp.eq.s32.totalorder %s9, 0
      %p71 = por %p69, %p70
      %p72 = scmp.ne.s32.totalorder %s64, %s66
      %p73 = scmp.eq.s32.totalorder %s14, 1
      %p74 = por %p72, %p73
      %p75 = scmp.ne.s32.totalorder %s66, %s67
      %p76 = scmp.eq.s32.totalorder %s14, 0
      %p77 = por %p75, %p76
      %p78 = scmp.ne.s32.totalorder %s66, %s67
      %p79 = scmp.eq.s32.totalorder %s15, 1
      %p80 = por %p78, %p79
      %p82 = scmp.ne.s32.totalorder %s67, %s81
      %p83 = scmp.eq.s32.totalorder %s15, 0
      %p84 = por %p82, %p83
      %s85 = ssub.s32 %s9, %s16
      %p86 = scmp.eq.s32.totalorder %s85, 0
      %s88 = sadd.s32 %s87, 1
      %s89 = scalar_select %p86, %s87, %s88
      %p92 = pneg %p86
      %p93 = scmp.eq.s32.totalorder %s9, 1
      %p94 = por %p92, %p93
      %p95 = scmp.ne.s32.totalorder %s87, %s90
      %p96 = scmp.eq.s32.totalorder %s9, 0
      %p97 = por %p95, %p96
      %p98 = scmp.ne.s32.totalorder %s87, %s90
      %p99 = scmp.eq.s32.totalorder %s14, 1
      %p100 = por %p98, %p99
      %p101 = scmp.ne.s32.totalorder %s90, %s91
      %p102 = scmp.eq.s32.totalorder %s14, 0
      %p103 = por %p101, %p102
      %p104 = scmp.ne.s32.totalorder %s90, %s91
      %p105 = scmp.eq.s32.totalorder %s15, 1
      %p106 = por %p104, %p105
      %p108 = scmp.ne.s32.totalorder %s91, %s107
      %p109 = scmp.eq.s32.totalorder %s15, 0
      %p110 = por %p108, %p109
      %p111 = scmp.le.s32.totalorder 1, %s9
      %p112 = scmp.lt.s32.totalorder %s9, 3
      %p113 = pnand %p111, %p112
      %p114 = pneg %p113
      // Predicated region
      $region9: #{decoder_forward.7} parent=5 // pred_check
        _
      $region10: #{decoder_forward.7} parent=5 // pred_check_branch
        %116 = sbr.rel (%p113) target = $region12
      $region11: #{decoder_forward.7} parent=5 // pred_region
        %s117 = ssub.s32 %s9, 1
        // Predicated region
        $region13: #{decoder_forward.7} parent=11 // pred_check
          %p118 = pneg %p56
        $region14: #{decoder_forward.7} parent=11 // pred_check_branch
          %120 = sbr.rel (%p118) target = $region16
        $region15: #{decoder_forward.7} parent=11 // pred_region
          _
        $region16: #{decoder_forward.7} parent=11 // pred_fallthru
          _
        // Predicated region
        $region17: #{decoder_forward.7} parent=11 // pred_check
          %p121 = pneg %p77
        $region18: #{decoder_forward.7} parent=11 // pred_check_branch
          %123 = sbr.rel (%p121) target = $region20
        $region19: #{decoder_forward.7} parent=11 // pred_region
          _
        $region20: #{decoder_forward.7} parent=11 // pred_fallthru
          _
      $region12: #{decoder_forward.7} parent=5 // pred_fallthru
        _
      %p124 = scmp.lt.s32.totalorder %s9, 2
      // Predicated region
      $region21: #{decoder_forward.7} parent=5 // pred_check
        %p125 = pneg %p124
      $region22: #{decoder_forward.7} parent=5 // pred_check_branch
        %127 = sbr.rel (%p125) target = $region24
      $region23: #{decoder_forward.7} parent=5 // pred_region
        // Predicated region
        $region25: #{decoder_forward.7} parent=23 // pred_check
          %p128 = pneg %p29
        $region26: #{decoder_forward.7} parent=23 // pred_check_branch
          %130 = sbr.rel (%p128) target = $region28
        $region27: #{decoder_forward.7} parent=23 // pred_region
          %s131 = sand.u32 %s19, 1
          %s132 = sand.u32 %s19, 1
          %s133 = smul.addr %s132, 432
          %s134 = scalar_lea.vmem [#allocation2], %s133
          %s135 = smul.u32 4, %s9
          %s136 = smul.addr %s135, 4
          %s137 = scalar_lea.vmem %s0, %s136
          // Predicated region
          $region29: #{decoder_forward.7} parent=27 // pred_check
            _
          $region30: #{decoder_forward.7} parent=27 // pred_check_branch
            %139 = sbr.rel (0) target = $region32
          $region31: #{decoder_forward.7} parent=27 // pred_region
            // Predicated region
            $region33: #{decoder_forward.7} parent=31 // pred_check
              _
            $region34: #{decoder_forward.7} parent=31 // pred_check_branch
              %141 = sbr.rel (0) target = $region36
            $region35: #{decoder_forward.7} parent=31 // pred_region
              loop: start=0, step=1, limit=1
              $region37: #{decoder_forward.7} parent=35 // loop_pre_header
                _
              $region38: #{decoder_forward.7} parent=35 // loop_header
                %s143 = sphi 0, %s147
                %p144 = scmp.ge.s32.totalorder %s143, 1
                %s148 = sphi %s137, %s137
                %s149 = sphi %s134, %s134
              $region39: #{decoder_forward.7} parent=35 // loop_header_branch
                %146 = sbr.rel (%p144) target = $region43
              $region40: #{decoder_forward.7} parent=35 // loop_body
                %v150 = vld [vmem:[%s148] sm:$0xff]
                %151 = vst [vmem:[%s149] sm:$0xff] %v150
                %v152 = vld [vmem:[%s148 + $0x8] sm:$0xff]
                %153 = vst [vmem:[%s149 + $0x8] sm:$0xff] %v152
                %v154 = vld [vmem:[%s148 + $0x20] sm:$0xff]
                %155 = vst [vmem:[%s149 + $0x10] sm:$0xff] %v154
                %v156 = vld [vmem:[%s148 + $0x28] sm:$0xff]
                %157 = vst [vmem:[%s149 + $0x18] sm:$0xff] %v156
                %v158 = vld [vmem:[%s148 + $0x40] sm:$0xff]
                %159 = vst [vmem:[%s149 + $0x20] sm:$0xff] %v158
                %v160 = vld [vmem:[%s148 + $0x48] sm:$0xff]
                %161 = vst [vmem:[%s149 + $0x28] sm:$0xff] %v160
                %v162 = vld [vmem:[%s148 + $0x60] sm:$0xff]
                %163 = vst [vmem:[%s149 + $0x30] sm:$0xff] %v162
                %v164 = vld [vmem:[%s148 + $0x68] sm:$0xff]
                %165 = vst [vmem:[%s149 + $0x38] sm:$0xff] %v164
                %v166 = vld [vmem:[%s148 + $0x80] sm:$0xff]
                %167 = vst [vmem:[%s149 + $0x40] sm:$0xff] %v166
                %v168 = vld [vmem:[%s148 + $0x88] sm:$0xff]
                %169 = vst [vmem:[%s149 + $0x48] sm:$0xff] %v168
                %v170 = vld [vmem:[%s148 + $0xa0] sm:$0xff]
                %171 = vst [vmem:[%s149 + $0x50] sm:$0xff] %v170
                %v172 = vld [vmem:[%s148 + $0xa8] sm:$0xff]
                %173 = vst [vmem:[%s149 + $0x58] sm:$0xff] %v172
                %v174 = vld [vmem:[%s148 + $0xc0] sm:$0xff]
                %175 = vst [vmem:[%s149 + $0x60] sm:$0xff] %v174
                %v176 = vld [vmem:[%s148 + $0xc8] sm:$0xff]
                %177 = vst [vmem:[%s149 + $0x68] sm:$0xff] %v176
                %v178 = vld [vmem:[%s148 + $0xe0] sm:$0xff]
                %179 = vst [vmem:[%s149 + $0x70] sm:$0xff] %v178
                %v180 = vld [vmem:[%s148 + $0xe8] sm:$0xff]
                %181 = vst [vmem:[%s149 + $0x78] sm:$0xff] %v180
                %v182 = vld [vmem:[%s148 + $0x100] sm:$0xff]
                %183 = vst [vmem:[%s149 + $0x80] sm:$0xff] %v182
                %v184 = vld [vmem:[%s148 + $0x108] sm:$0xff]
                %185 = vst [vmem:[%s149 + $0x88] sm:$0xff] %v184
                %v186 = vld [vmem:[%s148 + $0x120] sm:$0xff]
                %187 = vst [vmem:[%s149 + $0x90] sm:$0xff] %v186
                %v188 = vld [vmem:[%s148 + $0x128] sm:$0xff]
                %189 = vst [vmem:[%s149 + $0x98] sm:$0xff] %v188
                %v190 = vld [vmem:[%s148 + $0x140] sm:$0xff]
                %191 = vst [vmem:[%s149 + $0xa0] sm:$0xff] %v190
                %v192 = vld [vmem:[%s148 + $0x148] sm:$0xff]
                %193 = vst [vmem:[%s149 + $0xa8] sm:$0xff] %v192
                %v194 = vld [vmem:[%s148 + $0x160] sm:$0xff]
                %195 = vst [vmem:[%s149 + $0xb0] sm:$0xff] %v194
                %v196 = vld [vmem:[%s148 + $0x168] sm:$0xff]
                %197 = vst [vmem:[%s149 + $0xb8] sm:$0xff] %v196
                %v198 = vld [vmem:[%s148 + $0x180] sm:$0xff]
                %199 = vst [vmem:[%s149 + $0xc0] sm:$0xff] %v198
                %v200 = vld [vmem:[%s148 + $0x188] sm:$0xff]
                %201 = vst [vmem:[%s149 + $0xc8] sm:$0xff] %v200
                %v202 = vld [vmem:[%s148 + $0x1a0] sm:$0xff]
                %203 = vst [vmem:[%s149 + $0xd0] sm:$0xff] %v202
                %v204 = vld [vmem:[%s148 + $0x1a8] sm:$0xff]
                %205 = vst [vmem:[%s149 + $0xd8] sm:$0xff] %v204
                %v206 = vld [vmem:[%s148 + $0x1c0] sm:$0xff]
                %207 = vst [vmem:[%s149 + $0xe0] sm:$0xff] %v206
                %v208 = vld [vmem:[%s148 + $0x1c8] sm:$0xff]
                %209 = vst [vmem:[%s149 + $0xe8] sm:$0xff] %v208
                %v210 = vld [vmem:[%s148 + $0x1e0] sm:$0xff]
                %211 = vst [vmem:[%s149 + $0xf0] sm:$0xff] %v210
                %v212 = vld [vmem:[%s148 + $0x1e8] sm:$0xff]
                %213 = vst [vmem:[%s149 + $0xf8] sm:$0xff] %v212
                %v214 = vld [vmem:[%s148 + $0x200] sm:$0xff]
                %215 = vst [vmem:[%s149 + $0x100] sm:$0xff] %v214
                %v216 = vld [vmem:[%s148 + $0x208] sm:$0xff]
                %217 = vst [vmem:[%s149 + $0x108] sm:$0xff] %v216
                %v218 = vld [vmem:[%s148 + $0x220] sm:$0xff]
                %219 = vst [vmem:[%s149 + $0x110] sm:$0xff] %v218
                %v220 = vld [vmem:[%s148 + $0x228] sm:$0xff]
                %221 = vst [vmem:[%s149 + $0x118] sm:$0xff] %v220
                %v222 = vld [vmem:[%s148 + $0x240] sm:$0xff]
                %223 = vst [vmem:[%s149 + $0x120] sm:$0xff] %v222
                %v224 = vld [vmem:[%s148 + $0x248] sm:$0xff]
                %225 = vst [vmem:[%s149 + $0x128] sm:$0xff] %v224
                %v226 = vld [vmem:[%s148 + $0x260] sm:$0xff]
                %227 = vst [vmem:[%s149 + $0x130] sm:$0xff] %v226
                %v228 = vld [vmem:[%s148 + $0x268] sm:$0xff]
                %229 = vst [vmem:[%s149 + $0x138] sm:$0xff] %v228
                %v230 = vld [vmem:[%s148 + $0x280] sm:$0xff]
                %231 = vst [vmem:[%s149 + $0x140] sm:$0xff] %v230
                %v232 = vld [vmem:[%s148 + $0x288] sm:$0xff]
                %233 = vst [vmem:[%s149 + $0x148] sm:$0xff] %v232
                %v234 = vld [vmem:[%s148 + $0x2a0] sm:$0xff]
                %235 = vst [vmem:[%s149 + $0x150] sm:$0xff] %v234
                %v236 = vld [vmem:[%s148 + $0x2a8] sm:$0xff]
                %237 = vst [vmem:[%s149 + $0x158] sm:$0xff] %v236
                %v238 = vld [vmem:[%s148 + $0x2c0] sm:$0xff]
                %239 = vst [vmem:[%s149 + $0x160] sm:$0xff] %v238
                %v240 = vld [vmem:[%s148 + $0x2c8] sm:$0xff]
                %241 = vst [vmem:[%s149 + $0x168] sm:$0xff] %v240
                %v242 = vld [vmem:[%s148 + $0x2e0] sm:$0xff]
                %243 = vst [vmem:[%s149 + $0x170] sm:$0xff] %v242
                %v244 = vld [vmem:[%s148 + $0x2e8] sm:$0xff]
                %245 = vst [vmem:[%s149 + $0x178] sm:$0xff] %v244
                %v246 = vld [vmem:[%s148 + $0x300] sm:$0xff]
                %247 = vst [vmem:[%s149 + $0x180] sm:$0xff] %v246
                %v248 = vld [vmem:[%s148 + $0x308] sm:$0xff]
                %249 = vst [vmem:[%s149 + $0x188] sm:$0xff] %v248
                %v250 = vld [vmem:[%s148 + $0x320] sm:$0xff]
                %251 = vst [vmem:[%s149 + $0x190] sm:$0xff] %v250
                %v252 = vld [vmem:[%s148 + $0x328] sm:$0xff]
                %253 = vst [vmem:[%s149 + $0x198] sm:$0xff] %v252
                %v254 = vld [vmem:[%s148 + $0x340] sm:$0xff]
                %255 = vst [vmem:[%s149 + $0x1a0] sm:$0xff] %v254
                %v256 = vld [vmem:[%s148 + $0x348] sm:$0xff]
                %257 = vst [vmem:[%s149 + $0x1a8] sm:$0xff] %v256
              $region41: #{decoder_forward.7} parent=35 // loop_footer
                %s147 = sadd.s32 1, %s143
              $region42: #{decoder_forward.7} parent=35 // loop_footer_branch
                %142 = sbr.rel target = $region38
              $region43: #{decoder_forward.7} parent=35 // loop_exit
                _
            $region36: #{decoder_forward.7} parent=31 // pred_fallthru
              _
            // Predicated region
            $region44: #{decoder_forward.7} parent=31 // pred_check
              _
            $region45: #{decoder_forward.7} parent=31 // pred_check_branch
              %259 = sbr.rel target = $region47
            $region46: #{decoder_forward.7} parent=31 // pred_region
              _
            $region47: #{decoder_forward.7} parent=31 // pred_fallthru
              _
          $region32: #{decoder_forward.7} parent=27 // pred_fallthru
            _
          %260 = vnop
        $region28: #{decoder_forward.7} parent=23 // pred_fallthru
          _
      $region24: #{decoder_forward.7} parent=5 // pred_fallthru
        _
      %p261 = scmp.le.s32.totalorder 1, %s9
      %p262 = scmp.lt.s32.totalorder %s9, 3
      %p263 = pnand %p261, %p262
      %p264 = pneg %p263
      // Predicated region
      $region48: #{decoder_forward.7} parent=5 // pred_check
        _
      $region49: #{decoder_forward.7} parent=5 // pred_check_branch
        %266 = sbr.rel (%p263) target = $region51
      $region50: #{decoder_forward.7} parent=5 // pred_region
        %s267 = ssub.s32 %s9, 1
        %s268 = sand.u32 %s22, 1
        %s269 = sand.u32 %s22, 1
        %s270 = smul.addr %s269, 432
        %s271 = scalar_lea.vmem [#allocation2], %s270
        // Predicated region
        $region52: #{decoder_forward.7} parent=50 // pred_check
          %p272 = pneg %p35
        $region53: #{decoder_forward.7} parent=50 // pred_check_branch
          %274 = sbr.rel (%p272) target = $region55
        $region54: #{decoder_forward.7} parent=50 // pred_region
          _
        $region55: #{decoder_forward.7} parent=50 // pred_fallthru
          _
        %s275 = sand.u32 %s22, 1
        %s276 = sand.u32 %s22, 1
        %s277 = smul.addr %s276, 432
        %s278 = scalar_lea.vmem [#allocation2], %s277
        %p279 = pneg %p35
        %p280 = pneg %p32
        %p281 = pneg %p56
        %p282 = pneg %p53
        %p283 = pneg %p77
        %p284 = pneg %p74
        %p285 = pneg %p103
        %p286 = pneg %p100
        %s287 = smul.u32 4, %s14
        %p288 = scmp.lt.s32.totalorder %s287, 7
        %s289 = scalar_select %p288, %s287, 7
        %s290 = smul.addr %s289, 8
        %s291 = scalar_lea.vmem %s3, %s290
        %s292 = smul.u32 4, %s14
        %s293 = smul.u32 4, %s14
        %p294 = scmp.lt.s32.totalorder %s293, 7
        %s295 = scalar_select %p294, %s293, 7
        %s296 = smul.addr %s295, 8
        %s297 = scalar_lea.vmem %s3, %s296
        %s298 = smul.u32 4, %s14
        %v300 = vld [vmem:[%s1] sm:$0xff]
        %v301 = vld [vmem:[%s271] sm:$0xff]
        %v302 = vld [vmem:[%s271 + $0x8] sm:$0xff]
        %v303 = vld [vmem:[%s271 + $0x10] sm:$0xff]
        %v304 = vld [vmem:[%s271 + $0x18] sm:$0xff]
        %v305 = vld [vmem:[%s271 + $0x20] sm:$0xff]
        %v306 = vld [vmem:[%s271 + $0x28] sm:$0xff]
        %v307 = vld [vmem:[%s271 + $0x30] sm:$0xff]
        %v308 = vld [vmem:[%s271 + $0x38] sm:$0xff]
        %v309 = vld [vmem:[%s271 + $0x40] sm:$0xff]
        %v310 = vld [vmem:[%s271 + $0x48] sm:$0xff]
        %v311 = vld [vmem:[%s271 + $0x50] sm:$0xff]
        %v312 = vld [vmem:[%s271 + $0x58] sm:$0xff]
        %v313 = vld [vmem:[%s271 + $0x60] sm:$0xff]
        %v314 = vld [vmem:[%s271 + $0x68] sm:$0xff]
        %v315 = vld [vmem:[%s271 + $0x70] sm:$0xff]
        %v316 = vld [vmem:[%s271 + $0x78] sm:$0xff]
        %v317 = vld [vmem:[%s271 + $0x80] sm:$0xff]
        %v318 = vld [vmem:[%s271 + $0x88] sm:$0xff]
        %v319 = vld [vmem:[%s271 + $0x90] sm:$0xff]
        %v320 = vld [vmem:[%s271 + $0x98] sm:$0xff]
        %v321 = vld [vmem:[%s271 + $0xa0] sm:$0xff]
        %v322 = vld [vmem:[%s271 + $0xa8] sm:$0xff]
        %v323 = vld [vmem:[%s271 + $0xb0] sm:$0xff]
        %v324 = vld [vmem:[%s271 + $0xb8] sm:$0xff]
        %v325 = vld [vmem:[%s271 + $0xc0] sm:$0xff]
        %v326 = vld [vmem:[%s271 + $0xc8] sm:$0xff]
        %v327 = vld [vmem:[%s271 + $0xd0] sm:$0xff]
        %v328 = vld [vmem:[%s271 + $0xd8] sm:$0xff]
        %v329 = vld [vmem:[%s271 + $0xe0] sm:$0xff]
        %v330 = vld [vmem:[%s271 + $0xe8] sm:$0xff]
        %v331 = vld [vmem:[%s271 + $0xf0] sm:$0xff]
        %v332 = vld [vmem:[%s271 + $0xf8] sm:$0xff]
        %v333 = vld [vmem:[%s271 + $0x100] sm:$0xff]
        %v334 = vld [vmem:[%s271 + $0x108] sm:$0xff]
        %v335 = vld [vmem:[%s271 + $0x110] sm:$0xff]
        %v336 = vld [vmem:[%s271 + $0x118] sm:$0xff]
        %v337 = vld [vmem:[%s271 + $0x120] sm:$0xff]
        %v338 = vld [vmem:[%s271 + $0x128] sm:$0xff]
        %v339 = vld [vmem:[%s271 + $0x130] sm:$0xff]
        %v340 = vld [vmem:[%s271 + $0x138] sm:$0xff]
        %v341 = vld [vmem:[%s271 + $0x140] sm:$0xff]
        %v342 = vld [vmem:[%s271 + $0x148] sm:$0xff]
        %v343 = vld [vmem:[%s271 + $0x150] sm:$0xff]
        %v344 = vld [vmem:[%s271 + $0x158] sm:$0xff]
        %v345 = vld [vmem:[%s271 + $0x160] sm:$0xff]
        %v346 = vld [vmem:[%s271 + $0x168] sm:$0xff]
        %v347 = vld [vmem:[%s271 + $0x170] sm:$0xff]
        %v348 = vld [vmem:[%s271 + $0x178] sm:$0xff]
        %v349 = vld [vmem:[%s271 + $0x180] sm:$0xff]
        %v350 = vld [vmem:[%s271 + $0x188] sm:$0xff]
        %v351 = vld [vmem:[%s271 + $0x190] sm:$0xff]
        %v352 = vld [vmem:[%s271 + $0x198] sm:$0xff]
        %v353 = vld [vmem:[%s271 + $0x1a0] sm:$0xff]
        %v354 = vld [vmem:[%s271 + $0x1a8] sm:$0xff]
        %v355 = vld [vmem:[%s2] sm:$0xff]
        %357 = vset.pattern.permute.xlu0 0
        %358 = vperm.xlu0 %357, %v355
        %v359 = vpop.permute.xlu0 %358
        %v362 = vunpack.c.l.b16 %v300
        %v363 = vunpack.c.h.b16 %v300
        %v364 = vpack.c.b16 %v362, %v362
        %v365 = vpack.c.b16 %v363, %v363
        %v421 = vunpack.c.l.b16 %v301
        %v422 = vunpack.c.h.b16 %v301
        %v423 = vunpack.c.l.b16 %v302
        %v424 = vunpack.c.h.b16 %v302
        %v425 = vunpack.c.l.b16 %v303
        %v426 = vunpack.c.h.b16 %v303
        %v427 = vunpack.c.l.b16 %v304
        %v428 = vunpack.c.h.b16 %v304
        %v429 = vunpack.c.l.b16 %v305
        %v430 = vunpack.c.h.b16 %v305
        %v431 = vunpack.c.l.b16 %v306
        %v432 = vunpack.c.h.b16 %v306
        %v433 = vunpack.c.l.b16 %v307
        %v434 = vunpack.c.h.b16 %v307
        %v435 = vunpack.c.l.b16 %v308
        %v436 = vunpack.c.h.b16 %v308
        %v437 = vunpack.c.l.b16 %v309
        %v438 = vunpack.c.h.b16 %v309
        %v439 = vunpack.c.l.b16 %v310
        %v440 = vunpack.c.h.b16 %v310
        %v441 = vunpack.c.l.b16 %v311
        %v442 = vunpack.c.h.b16 %v311
        %v443 = vunpack.c.l.b16 %v312
        %v444 = vunpack.c.h.b16 %v312
        %v445 = vunpack.c.l.b16 %v313
        %v446 = vunpack.c.h.b16 %v313
        %v447 = vunpack.c.l.b16 %v314
        %v448 = vunpack.c.h.b16 %v314
        %v449 = vunpack.c.l.b16 %v315
        %v450 = vunpack.c.h.b16 %v315
        %v451 = vunpack.c.l.b16 %v316
        %v452 = vunpack.c.h.b16 %v316
        %v453 = vunpack.c.l.b16 %v317
        %v454 = vunpack.c.h.b16 %v317
        %v455 = vunpack.c.l.b16 %v318
        %v456 = vunpack.c.h.b16 %v318
        %v457 = vunpack.c.l.b16 %v319
        %v458 = vunpack.c.h.b16 %v319
        %v459 = vunpack.c.l.b16 %v320
        %v460 = vunpack.c.h.b16 %v320
        %v461 = vunpack.c.l.b16 %v321
        %v462 = vunpack.c.h.b16 %v321
        %v463 = vunpack.c.l.b16 %v322
        %v464 = vunpack.c.h.b16 %v322
        %v465 = vunpack.c.l.b16 %v323
        %v466 = vunpack.c.h.b16 %v323
        %v467 = vunpack.c.l.b16 %v324
        %v468 = vunpack.c.h.b16 %v324
        %v469 = vunpack.c.l.b16 %v325
        %v470 = vunpack.c.h.b16 %v325
        %v471 = vunpack.c.l.b16 %v326
        %v472 = vunpack.c.h.b16 %v326
        %v473 = vunpack.c.l.b16 %v327
        %v474 = vunpack.c.h.b16 %v327
        %v475 = vunpack.c.l.b16 %v328
        %v476 = vunpack.c.h.b16 %v328
        %v477 = vunpack.c.l.b16 %v329
        %v478 = vunpack.c.h.b16 %v329
        %v479 = vunpack.c.l.b16 %v330
        %v480 = vunpack.c.h.b16 %v330
        %v481 = vunpack.c.l.b16 %v331
        %v482 = vunpack.c.h.b16 %v331
        %v483 = vunpack.c.l.b16 %v332
        %v484 = vunpack.c.h.b16 %v332
        %v485 = vunpack.c.l.b16 %v333
        %v486 = vunpack.c.h.b16 %v333
        %v487 = vunpack.c.l.b16 %v334
        %v488 = vunpack.c.h.b16 %v334
        %v489 = vunpack.c.l.b16 %v335
        %v490 = vunpack.c.h.b16 %v335
        %v491 = vunpack.c.l.b16 %v336
        %v492 = vunpack.c.h.b16 %v336
        %v493 = vunpack.c.l.b16 %v337
        %v494 = vunpack.c.h.b16 %v337
        %v495 = vunpack.c.l.b16 %v338
        %v496 = vunpack.c.h.b16 %v338
        %v497 = vunpack.c.l.b16 %v339
        %v498 = vunpack.c.h.b16 %v339
        %v499 = vunpack.c.l.b16 %v340
        %v500 = vunpack.c.h.b16 %v340
        %v501 = vunpack.c.l.b16 %v341
        %v502 = vunpack.c.h.b16 %v341
        %v503 = vunpack.c.l.b16 %v342
        %v504 = vunpack.c.h.b16 %v342
        %v505 = vunpack.c.l.b16 %v343
        %v506 = vunpack.c.h.b16 %v343
        %v507 = vunpack.c.l.b16 %v344
        %v508 = vunpack.c.h.b16 %v344
        %v509 = vunpack.c.l.b16 %v345
        %v510 = vunpack.c.h.b16 %v345
        %v511 = vunpack.c.l.b16 %v346
        %v512 = vunpack.c.h.b16 %v346
        %v513 = vunpack.c.l.b16 %v347
        %v514 = vunpack.c.h.b16 %v347
        %v515 = vunpack.c.l.b16 %v348
        %v516 = vunpack.c.h.b16 %v348
        %v517 = vunpack.c.l.b16 %v349
        %v518 = vunpack.c.h.b16 %v349
        %v519 = vunpack.c.l.b16 %v350
        %v520 = vunpack.c.h.b16 %v350
        %v521 = vunpack.c.l.b16 %v351
        %v522 = vunpack.c.h.b16 %v351
        %v523 = vunpack.c.l.b16 %v352
        %v524 = vunpack.c.h.b16 %v352
        %v525 = vunpack.c.l.b16 %v353
        %v526 = vunpack.c.h.b16 %v353
        %v527 = vunpack.c.l.b16 %v354
        %v528 = vunpack.c.h.b16 %v354
        %v529 = vpack.c.b16 %v425, %v421
        %v530 = vpack.c.b16 %v426, %v422
        %v531 = vpack.c.b16 %v427, %v423
        %v532 = vpack.c.b16 %v428, %v424
        %v533 = vpack.c.b16 %v433, %v429
        %v534 = vpack.c.b16 %v434, %v430
        %v535 = vpack.c.b16 %v435, %v431
        %v536 = vpack.c.b16 %v436, %v432
        %v537 = vpack.c.b16 %v441, %v437
        %v538 = vpack.c.b16 %v442, %v438
        %v539 = vpack.c.b16 %v443, %v439
        %v540 = vpack.c.b16 %v444, %v440
        %v541 = vpack.c.b16 %v449, %v445
        %v542 = vpack.c.b16 %v450, %v446
        %v543 = vpack.c.b16 %v451, %v447
        %v544 = vpack.c.b16 %v452, %v448
        %v545 = vpack.c.b16 %v457, %v453
        %v546 = vpack.c.b16 %v458, %v454
        %v547 = vpack.c.b16 %v459, %v455
        %v548 = vpack.c.b16 %v460, %v456
        %v549 = vpack.c.b16 %v465, %v461
        %v550 = vpack.c.b16 %v466, %v462
        %v551 = vpack.c.b16 %v467, %v463
        %v552 = vpack.c.b16 %v468, %v464
        %v553 = vpack.c.b16 %v473, %v469
        %v554 = vpack.c.b16 %v474, %v470
        %v555 = vpack.c.b16 %v475, %v471
        %v556 = vpack.c.b16 %v476, %v472
        %v557 = vpack.c.b16 %v481, %v477
        %v558 = vpack.c.b16 %v482, %v478
        %v559 = vpack.c.b16 %v483, %v479
        %v560 = vpack.c.b16 %v484, %v480
        %v561 = vpack.c.b16 %v489, %v485
        %v562 = vpack.c.b16 %v490, %v486
        %v563 = vpack.c.b16 %v491, %v487
        %v564 = vpack.c.b16 %v492, %v488
        %v565 = vpack.c.b16 %v497, %v493
        %v566 = vpack.c.b16 %v498, %v494
        %v567 = vpack.c.b16 %v499, %v495
        %v568 = vpack.c.b16 %v500, %v496
        %v569 = vpack.c.b16 %v505, %v501
        %v570 = vpack.c.b16 %v506, %v502
        %v571 = vpack.c.b16 %v507, %v503
        %v572 = vpack.c.b16 %v508, %v504
        %v573 = vpack.c.b16 %v513, %v509
        %v574 = vpack.c.b16 %v514, %v510
        %v575 = vpack.c.b16 %v515, %v511
        %v576 = vpack.c.b16 %v516, %v512
        %v577 = vpack.c.b16 %v521, %v517
        %v578 = vpack.c.b16 %v522, %v518
        %v579 = vpack.c.b16 %v523, %v519
        %v580 = vpack.c.b16 %v524, %v520
        %v581 = vpack.c.b16 %v525, %v525
        %v582 = vpack.c.b16 %v526, %v526
        %v583 = vpack.c.b16 %v527, %v527
        %v584 = vpack.c.b16 %v528, %v528
        %vm637 = vcmask 719872
        %v639 = vsel %vm637, %v365, 0
        %vm641 = vcmask 1043456
        %v643 = vsel %vm641, %v581, 0
        %v646 = vsel %vm641, %v582, 0
        %v649 = vsel %vm641, %v583, 0
        %v652 = vsel %vm641, %v584, 0
        %654 = vmatprep.subr.bf16.mxu0 %v530
        %655 = vmatpush1.bf16.msra.mxu0 %v529
        %656 = vmatprep.subr.bf16.mxu0 %v534
        %657 = vmatpush1.bf16.msra.mxu0 %v533
        %658 = vmatprep.subr.bf16.mxu0 %v538
        %659 = vmatpush1.bf16.msra.mxu0 %v537
        %660 = vmatprep.subr.bf16.mxu0 %v542
        %661 = vmatpush1.bf16.msra.mxu0 %v541
        %662 = vmatprep.subr.bf16.mxu0 %v546
        %663 = vmatpush1.bf16.msra.mxu0 %v545
        %664 = vmatprep.subr.bf16.mxu0 %v550
        %665 = vmatpush1.bf16.msra.mxu0 %v549
        %666 = vmatprep.subr.bf16.mxu0 %v554
        %667 = vmatpush1.bf16.msra.mxu0 %v553
        %668 = vmatprep.subr.bf16.mxu0 %v558
        %669 = vmatpush1.bf16.msra.mxu0 %v557
        %670 = vmatprep.subr.bf16.mxu0 %v562
        %671 = vmatpush1.bf16.msra.mxu0 %v561
        %672 = vmatprep.subr.bf16.mxu0 %v566
        %673 = vmatpush1.bf16.msra.mxu0 %v565
        %674 = vmatprep.subr.bf16.mxu0 %v570
        %675 = vmatpush1.bf16.msra.mxu0 %v569
        %676 = vmatprep.subr.bf16.mxu0 %v574
        %677 = vmatpush1.bf16.msra.mxu0 %v573
        %678 = vmatprep.subr.bf16.mxu0 %v578
        %679 = vmatpush1.bf16.msra.mxu0 %v577
        %680 = vmatprep.subr.bf16.mxu0 %v646
        %681 = vmatpush1.bf16.msra.mxu0 %v643
        %682 = vmatprep.subr.bf16.mxu0 0
        %683 = vmatpush1.bf16.msra.mxu0 0
        %684 = vmatprep.subr.bf16.mxu0 0
        %685 = vmatpush1.bf16.msra.mxu0 0
        %686 = vmatprep.mubr.bf16.mxu0 %v639
        %687 = vmatmul.mubr.bf16.gmra.mrb[0].mxu0 %v364
        %v688 = vpop.f32.mrb[0].mxu0
        %v689 = vadd.f32 %v359, %v688
        %v690 = vpop.f32.mrb[0].mxu0
        %v691 = vadd.f32 %v359, %v690
        %v692 = vpop.f32.mrb[0].mxu0
        %v693 = vpop.f32.mrb[0].mxu0
        %694 = vdwg.mxu0
        %695 = vmatprep.subr.bf16.mxu0 %v532
        %696 = vmatpush1.bf16.msra.mxu0 %v531
        %697 = vmatprep.subr.bf16.mxu0 %v536
        %698 = vmatpush1.bf16.msra.mxu0 %v535
        %699 = vmatprep.subr.bf16.mxu0 %v540
        %700 = vmatpush1.bf16.msra.mxu0 %v539
        %701 = vmatprep.subr.bf16.mxu0 %v544
        %702 = vmatpush1.bf16.msra.mxu0 %v543
        %703 = vmatprep.subr.bf16.mxu0 %v548
        %704 = vmatpush1.bf16.msra.mxu0 %v547
        %705 = vmatprep.subr.bf16.mxu0 %v552
        %706 = vmatpush1.bf16.msra.mxu0 %v551
        %707 = vmatprep.subr.bf16.mxu0 %v556
        %708 = vmatpush1.bf16.msra.mxu0 %v555
        %709 = vmatprep.subr.bf16.mxu0 %v560
        %710 = vmatpush1.bf16.msra.mxu0 %v559
        %711 = vmatprep.subr.bf16.mxu0 %v564
        %712 = vmatpush1.bf16.msra.mxu0 %v563
        %713 = vmatprep.subr.bf16.mxu0 %v568
        %714 = vmatpush1.bf16.msra.mxu0 %v567
        %715 = vmatprep.subr.bf16.mxu0 %v572
        %716 = vmatpush1.bf16.msra.mxu0 %v571
        %717 = vmatprep.subr.bf16.mxu0 %v576
        %718 = vmatpush1.bf16.msra.mxu0 %v575
        %719 = vmatprep.subr.bf16.mxu0 %v580
        %720 = vmatpush1.bf16.msra.mxu0 %v579
        %721 = vmatprep.subr.bf16.mxu0 %v652
        %722 = vmatpush1.bf16.msra.mxu0 %v649
        %723 = vmatprep.subr.bf16.mxu0 0
        %724 = vmatpush1.bf16.msra.mxu0 0
        %725 = vmatprep.subr.bf16.mxu0 0
        %726 = vmatpush1.bf16.msra.mxu0 0
        %727 = vmatprep.mubr.bf16.mxu0 %v639
        %728 = vmatmul.mubr.bf16.gmra.mrb[0].mxu0 %v364
        %v729 = vpop.f32.mrb[0].mxu0
        %v730 = vadd.f32 %v359, %v729
        %v731 = vpop.f32.mrb[0].mxu0
        %v732 = vadd.f32 %v359, %v731
        %v733 = vpop.f32.mrb[0].mxu0
        %v734 = vpop.f32.mrb[0].mxu0
        %735 = vdwg.mxu0
        %736 = vst [vmem:[%s297] sm:$0xff] %v689
        %737 = vst [vmem:[%s297 + $0x8] sm:$0xff] %v691
        %738 = vst [vmem:[%s297 + $0x10] sm:$0xff] %v730
        %739 = vst [vmem:[%s297 + $0x18] sm:$0xff] %v732
        %s740 = smul.u32 4, %s14
        %p741 = scmp.lt.s32.totalorder %s740, 7
        %s742 = scalar_select %p741, %s740, 7
        %s743 = smul.addr %s742, 8
        %s744 = scalar_lea.vmem %s3, %s743
        // Predicated region
        $region56: #{decoder_forward.7} parent=50 // pred_check
          %p745 = pneg %p100
        $region57: #{decoder_forward.7} parent=50 // pred_check_branch
          %747 = sbr.rel (%p745) target = $region59
        $region58: #{decoder_forward.7} parent=50 // pred_region
          %s748 = smul.u32 4, %s14
        $region59: #{decoder_forward.7} parent=50 // pred_fallthru
          _
      $region51: #{decoder_forward.7} parent=5 // pred_fallthru
        _
      %p749 = scmp.le.s32.totalorder 2, %s9
      // Predicated region
      $region60: #{decoder_forward.7} parent=5 // pred_check
        %p750 = pneg %p749
      $region61: #{decoder_forward.7} parent=5 // pred_check_branch
        %752 = sbr.rel (%p750) target = $region63
      $region62: #{decoder_forward.7} parent=5 // pred_region
        %s753 = ssub.s32 %s9, 2
        // Predicated region
        $region64: #{decoder_forward.7} parent=62 // pred_check
          %p754 = pneg %p106
        $region65: #{decoder_forward.7} parent=62 // pred_check_branch
          %756 = sbr.rel (%p754) target = $region67
        $region66: #{decoder_forward.7} parent=62 // pred_region
          %s757 = smul.u32 4, %s15
          %p758 = scmp.lt.s32.totalorder %s757, 7
          %s759 = scalar_select %p758, %s757, 7
          %s760 = smul.addr %s759, 8
          %s761 = scalar_lea.vmem %s3, %s760
        $region67: #{decoder_forward.7} parent=62 // pred_fallthru
          _
      $region63: #{decoder_forward.7} parent=5 // pred_fallthru
        _
    $region6: #{decoder_forward.7} parent=1 // loop_footer
      %s13 = sadd.s32 1, %s9
    $region7: #{decoder_forward.7} parent=1 // loop_footer_branch
      %8 = sbr.rel target = $region3
    $region8: #{decoder_forward.7} parent=1 // loop_exit
      _

</llo_original>
